<compile_context>
chip_gen: v7x
topology: tpu7x:2x2x1
jax: 0.10.0
libtpu: 0.0.40
codegen_flags: <defaults>
</compile_context>

<pallas_src>
import functools
import math

import jax
import jax.numpy as jnp
from jax import lax
from jax.experimental import pallas as pl
from jax.experimental.pallas import tpu as pltpu


def _mha_kernel(*refs, n_heads, emb_size, has_mask, emit_attn):
    """Fused MHA forward for one batch row (grid=(B,)).

    refs layout (in order):
      q, k, v                      : (1, S, D) activation blocks
      wq, bq, wk, bk, wv, bv, wo, bo : (D, D) weights / (1, D) biases (resident)
      [mask]                       : (1, S, S) int8 (only if has_mask)
      out                          : (1, S, D) output block
      [attn]                       : (1, H, S, S) attention output block (if emit_attn)
      ctx                          : (S, D) f32 VMEM scratch
    """
    (q_ref, k_ref, v_ref,
     wq_ref, bq_ref, wk_ref, bk_ref, wv_ref, bv_ref, wo_ref, bo_ref) = refs[:11]
    pos = 11
    mask_ref = None
    if has_mask:
        mask_ref = refs[pos]
        pos += 1
    out_ref = refs[pos]
    pos += 1
    attn_ref = None
    if emit_attn:
        attn_ref = refs[pos]
        pos += 1
    ctx_ref = refs[pos]

    x_q = q_ref[0]                      # (S, D)
    x_k = k_ref[0]
    x_v = v_ref[0]

    scale = 1.0 / math.sqrt(emb_size)

    # QKV projections — MXU matmuls, f32 accumulation, intermediates stay in
    # VMEM.  The 1/sqrt(E) softmax scale is folded into q here (S*D multiplies)
    # instead of scaling every (S, S) logits tile (H*S*S multiplies).
    q = (jnp.dot(x_q, wq_ref[...], preferred_element_type=jnp.float32)
         + bq_ref[...]) * scale
    k = jnp.dot(x_k, wk_ref[...], preferred_element_type=jnp.float32) + bk_ref[...]
    v = jnp.dot(x_v, wv_ref[...], preferred_element_type=jnp.float32) + bv_ref[...]

    # Hoist the mask predicate out of the unrolled head loop: one S*S compare
    # per grid step instead of H (the tracer does not reliably CSE it).
    if has_mask:
        mask_zero = mask_ref[0] == 0    # (S, S) bool

    # q @ k^T as an NT contraction — MXU consumes it directly, no transpose.
    nt_dims = (((1,), (1,)), ((), ()))

    for h in range(n_heads):            # static -> fully unrolled
        lo = h * emb_size
        hi = lo + emb_size
        q_h = q[:, lo:hi]               # (S, E)
        k_h = k[:, lo:hi]
        v_h = v[:, lo:hi]

        logits = lax.dot_general(q_h, k_h, dimension_numbers=nt_dims,
                                 preferred_element_type=jnp.float32)   # (S, S)
        if has_mask:
            logits = jnp.where(mask_zero, -1e9, logits)

        # Numerically stable softmax along the key axis.  The divide is moved
        # to the EUP via approx reciprocal; one Newton step on the (S, 1)
        # column restores ~f32 accuracy at negligible VALU cost.
        logits = logits - jnp.max(logits, axis=-1, keepdims=True)
        p = jnp.exp(logits)
        s = jnp.sum(p, axis=-1, keepdims=True)                         # (S, 1)
        inv = pl.reciprocal(s, approx=True)
        inv = inv * (2.0 - s * inv)
        attn = p * inv                                                 # (S, S)

        if emit_attn:
            attn_ref[0, h, :, :] = attn.astype(attn_ref.dtype)

        # Write this head's context straight into the VMEM scratch slab:
        # bounds live ranges (no H live (S, E) tiles) and avoids the
        # lane-shuffle copies of a jnp.concatenate.
        ctx_ref[:, lo:hi] = jnp.dot(attn, v_h,
                                    preferred_element_type=jnp.float32)  # (S, E)

    out = (jnp.dot(ctx_ref[...], wo_ref[...], preferred_element_type=jnp.float32)
           + bo_ref[...])
    out_ref[0] = out.astype(out_ref.dtype)


def _round_up(x, m):
    return ((x + m - 1) // m) * m


def _block_vmem_bytes(block_shape, dtype):
    """Bytes of one VMEM buffer for a block, padded to (8, 128) tiling."""
    dims = list(block_shape)
    if len(dims) >= 1:
        dims[-1] = _round_up(dims[-1], 128)
    if len(dims) >= 2:
        dims[-2] = _round_up(dims[-2], 8)
    n = 1
    for d in dims:
        n *= int(d)
    return n * jnp.dtype(dtype).itemsize


def multi_headed_attention(query, key, value, params, *, n_heads, emb_size,
                           mask=None, attn_dtype=jnp.float32,
                           return_attention=True):
    """query/key/value: (B, S, D) with D == n_heads * emb_size.
    params: dict of wq/bq/wk/bk/wv/bv/wo/bo with w: (D, D), b: (1, D).
    mask (optional): (B, S, S); 0 -> masked out (fill -1e9). Cast to int8 for DMA.
    attn_dtype: dtype of the returned attention scores (bf16 halves HBM writeback).
    Returns output (B, S, D) and, if return_attention, attention (B, H, S, S)."""
    B, S, D = query.shape
    if D != n_heads * emb_size:
        raise ValueError(f"model_size {D} != n_heads*emb_size {n_heads * emb_size}")

    has_mask = mask is not None
    kernel = functools.partial(_mha_kernel, n_heads=n_heads, emb_size=emb_size,
                               has_mask=has_mask, emit_attn=return_attention)

    row_spec = pl.BlockSpec((1, S, D), lambda b: (b, 0, 0))
    w_spec = pl.BlockSpec((D, D), lambda b: (0, 0))      # constant index -> resident
    b_spec = pl.BlockSpec((1, D), lambda b: (0, 0))      # lane-dense bias row

    in_specs = [row_spec, row_spec, row_spec,
                w_spec, b_spec, w_spec, b_spec, w_spec, b_spec, w_spec, b_spec]
    inputs = [query, key, value,
              params["wq"], params["bq"], params["wk"], params["bk"],
              params["wv"], params["bv"], params["wo"], params["bo"]]
    if has_mask:
        mask = mask.astype(jnp.int8)                     # 4x less mask DMA than int32
        in_specs.append(pl.BlockSpec((1, S, S), lambda b: (b, 0, 0)))
        inputs.append(mask)

    out_shapes = [jax.ShapeDtypeStruct((B, S, D), query.dtype)]
    out_specs = [pl.BlockSpec((1, S, D), lambda b: (b, 0, 0))]
    if return_attention:
        out_shapes.append(jax.ShapeDtypeStruct((B, n_heads, S, S), attn_dtype))
        out_specs.append(pl.BlockSpec((1, n_heads, S, S), lambda b: (b, 0, 0, 0)))

    scratch_shapes = [pltpu.VMEM((S, D), jnp.float32)]

    # Scoped-VMEM budget from the actual blocks: double-buffered inputs/outputs
    # plus the scratch slab, 2x margin; never below the 32 MiB default.
    vmem_bytes = 0
    for spec, x in zip(in_specs, inputs):
        vmem_bytes += 2 * _block_vmem_bytes(spec.block_shape, x.dtype)
    for spec, sh in zip(out_specs, out_shapes):
        vmem_bytes += 2 * _block_vmem_bytes(spec.block_shape, sh.dtype)
    vmem_bytes += _block_vmem_bytes((S, D), jnp.float32)
    vmem_limit = int(min(100 * 1024 * 1024, max(32 * 1024 * 1024, 2 * vmem_bytes)))

    outs = pl.pallas_call(
        kernel,
        out_shape=tuple(out_shapes),
        grid_spec=pltpu.PrefetchScalarGridSpec(
            num_scalar_prefetch=0,
            grid=(B,),
            in_specs=in_specs,
            out_specs=tuple(out_specs),
            scratch_shapes=scratch_shapes,
        ),
        compiler_params=pltpu.CompilerParams(
            dimension_semantics=("parallel",),
            vmem_limit_bytes=vmem_limit,
        ),
    )(*inputs)

    if return_attention:
        out, attn = outs
        return out, attn
    return outs[0] if isinstance(outs, (tuple, list)) else outs


def init_params(rng, model_size):
    """Linear weights/biases (x @ W + b convention; W is (in, out))."""
    keys = jax.random.split(rng, 8)
    bound = 1.0 / math.sqrt(model_size)

    def w(k):
        return jax.random.uniform(k, (model_size, model_size), jnp.float32, -bound, bound)

    def b(k):
        return jax.random.uniform(k, (1, model_size), jnp.float32, -bound, bound)

    return {"wq": w(keys[0]), "bq": b(keys[1]),
            "wk": w(keys[2]), "bk": b(keys[3]),
            "wv": w(keys[4]), "bv": b(keys[5]),
            "wo": w(keys[6]), "bo": b(keys[7])}


def mha_reference(query, key, value, params, *, n_heads, emb_size, mask=None):
    """Plain-JAX reference mirroring the PyTorch module."""
    B, S, D = query.shape

    def lin(x, w, b):
        return x @ w + b

    q = lin(query, params["wq"], params["bq"]).reshape(B, S, n_heads, emb_size).transpose(0, 2, 1, 3)
    k = lin(key, params["wk"], params["bk"]).reshape(B, S, n_heads, emb_size).transpose(0, 2, 1, 3)
    v = lin(value, params["wv"], params["bv"]).reshape(B, S, n_heads, emb_size).transpose(0, 2, 1, 3)

    logits = jnp.einsum("bhqe,bhke->bhqk", q, k) / math.sqrt(emb_size)
    if mask is not None:
        logits = jnp.where(mask[:, None, :, :] == 0, -1e9, logits)
    attn = jax.nn.softmax(logits, axis=-1)
    ctx = jnp.einsum("bhqk,bhke->bhqe", attn, v)
    ctx = ctx.transpose(0, 2, 1, 3).reshape(B, S, D)
    return ctx @ params["wo"] + params["bo"], attn


if __name__ == "__main__":
    # Small shapes consistent with the module: batch=2, seq=8, n_heads=4,
    # emb_size=8 -> model_size=32.
    B, S, H, E = 2, 8, 4, 8
    D = H * E

    root = jax.random.PRNGKey(0)
    kq, kk, kv, kp = jax.random.split(root, 4)
    query = jax.random.normal(kq, (B, S, D), jnp.float32)
    key_t = jax.random.normal(kk, (B, S, D), jnp.float32)
    value = jax.random.normal(kv, (B, S, D), jnp.float32)
    params = init_params(kp, D)

    # --- unmasked path ---
    out, attn = multi_headed_attention(query, key_t, value, params, n_heads=H, emb_size=E)
    out = jax.block_until_ready(out)
    ref_out, ref_attn = mha_reference(query, key_t, value, params, n_heads=H, emb_size=E)
    assert out.shape == (B, S, D) and attn.shape == (B, H, S, S)
    assert jnp.allclose(out, ref_out, atol=1e-2, rtol=1e-2), "output mismatch (no mask)"
    assert jnp.allclose(attn, ref_attn, atol=1e-3, rtol=1e-3), "attention mismatch (no mask)"

    # --- masked path (causal mask, broadcast over heads like mask.unsqueeze(1)) ---
    mask = jnp.broadcast_to(jnp.tril(jnp.ones((S, S), jnp.int32)), (B, S, S))
    out_m, attn_m = multi_headed_attention(query, key_t, value, params,
                                           n_heads=H, emb_size=E, mask=mask)
    out_m = jax.block_until_ready(out_m)
    ref_out_m, ref_attn_m = mha_reference(query, key_t, value, params,
                                          n_heads=H, emb_size=E, mask=mask)
    assert jnp.allclose(out_m, ref_out_m, atol=1e-2, rtol=1e-2), "output mismatch (mask)"
    assert jnp.allclose(attn_m, ref_attn_m, atol=1e-3, rtol=1e-3), "attention mismatch (mask)"

    # --- attention-score output dropped (no (B,H,S,S) HBM writeback) ---
    out_na = multi_headed_attention(query, key_t, value, params, n_heads=H,
                                    emb_size=E, return_attention=False)
    out_na = jax.block_until_ready(out_na)
    assert jnp.allclose(out_na, ref_out, atol=1e-2, rtol=1e-2), "output mismatch (no attn out)"

    print("KERNEL_OK")
</pallas_src>

<mosaic_0001>
module attributes {stable_mosaic.version = 11 : i64} {
  func.func @_mha_kernel(%arg0: i32, %arg1: memref<1x8x32xf32, #tpu.memory_space<vmem>>, %arg2: memref<1x8x32xf32, #tpu.memory_space<vmem>>, %arg3: memref<1x8x32xf32, #tpu.memory_space<vmem>>, %arg4: memref<32x32xf32, #tpu.memory_space<vmem>>, %arg5: memref<1x32xf32, #tpu.memory_space<vmem>>, %arg6: memref<32x32xf32, #tpu.memory_space<vmem>>, %arg7: memref<1x32xf32, #tpu.memory_space<vmem>>, %arg8: memref<32x32xf32, #tpu.memory_space<vmem>>, %arg9: memref<1x32xf32, #tpu.memory_space<vmem>>, %arg10: memref<32x32xf32, #tpu.memory_space<vmem>>, %arg11: memref<1x32xf32, #tpu.memory_space<vmem>>, %arg12: memref<1x8x32xf32, #tpu.memory_space<vmem>>, %arg13: memref<1x4x8x8xf32, #tpu.memory_space<vmem>>, %arg14: memref<8x32xf32, #tpu.memory_space<vmem>>) attributes {dimension_semantics = [#tpu.dimension_semantics<parallel>], iteration_bounds = array<i64: 2>, scalar_prefetch = 0 : i64, scratch_operands = 1 : i64, tpu.core_type = #tpu.core_type<tc>, window_params = [{transform_indices = @transform_0, window_bounds = array<i64: 1, 8, 32>}, {transform_indices = @transform_1, window_bounds = array<i64: 1, 8, 32>}, {transform_indices = @transform_2, window_bounds = array<i64: 1, 8, 32>}, {pipeline_mode = #tpu.pipeline_mode<synchronous>, transform_indices = @transform_3, window_bounds = array<i64: 32, 32>}, {pipeline_mode = #tpu.pipeline_mode<synchronous>, transform_indices = @transform_4, window_bounds = array<i64: 1, 32>}, {pipeline_mode = #tpu.pipeline_mode<synchronous>, transform_indices = @transform_5, window_bounds = array<i64: 32, 32>}, {pipeline_mode = #tpu.pipeline_mode<synchronous>, transform_indices = @transform_6, window_bounds = array<i64: 1, 32>}, {pipeline_mode = #tpu.pipeline_mode<synchronous>, transform_indices = @transform_7, window_bounds = array<i64: 32, 32>}, {pipeline_mode = #tpu.pipeline_mode<synchronous>, transform_indices = @transform_8, window_bounds = array<i64: 1, 32>}, {pipeline_mode = #tpu.pipeline_mode<synchronous>, transform_indices = @transform_9, window_bounds = array<i64: 32, 32>}, {pipeline_mode = #tpu.pipeline_mode<synchronous>, transform_indices = @transform_10, window_bounds = array<i64: 1, 32>}, {transform_indices = @transform_11, window_bounds = array<i64: 1, 8, 32>}, {transform_indices = @transform_12, window_bounds = array<i64: 1, 4, 8, 8>}]} {
    %c0 = arith.constant 0 : index
    %c0_0 = arith.constant 0 : index
    %c0_1 = arith.constant 0 : index
    %0 = vector.load %arg1[%c0, %c0_0, %c0_1] : memref<1x8x32xf32, #tpu.memory_space<vmem>>, vector<1x8x32xf32>
    %1 = vector.shape_cast %0 : vector<1x8x32xf32> to vector<8x32xf32>
    %c0_2 = arith.constant 0 : index
    %c0_3 = arith.constant 0 : index
    %c0_4 = arith.constant 0 : index
    %2 = vector.load %arg2[%c0_2, %c0_3, %c0_4] : memref<1x8x32xf32, #tpu.memory_space<vmem>>, vector<1x8x32xf32>
    %3 = vector.shape_cast %2 : vector<1x8x32xf32> to vector<8x32xf32>
    %c0_5 = arith.constant 0 : index
    %c0_6 = arith.constant 0 : index
    %c0_7 = arith.constant 0 : index
    %4 = vector.load %arg3[%c0_5, %c0_6, %c0_7] : memref<1x8x32xf32, #tpu.memory_space<vmem>>, vector<1x8x32xf32>
    %5 = vector.shape_cast %4 : vector<1x8x32xf32> to vector<8x32xf32>
    %c0_8 = arith.constant 0 : index
    %c0_9 = arith.constant 0 : index
    %6 = vector.load %arg4[%c0_8, %c0_9] : memref<32x32xf32, #tpu.memory_space<vmem>>, vector<32x32xf32>
    %cst = arith.constant dense<0.000000e+00> : vector<8x32xf32>
    %7 = tpu.matmul %1, %6, %cst {dimension_numbers = #tpu.dot_dimension_numbers<[1], [0], [0], [1], [0, 0, 1, 1], [], []>} : vector<8x32xf32>, vector<32x32xf32>, vector<8x32xf32> -> vector<8x32xf32>
    %c0_10 = arith.constant 0 : index
    %c0_11 = arith.constant 0 : index
    %8 = vector.load %arg5[%c0_10, %c0_11] : memref<1x32xf32, #tpu.memory_space<vmem>>, vector<1x32xf32>
    %9 = vector.broadcast %8 : vector<1x32xf32> to vector<8x32xf32>
    %10 = arith.addf %7, %9 : vector<8x32xf32>
    %cst_12 = arith.constant 0.353553385 : f32
    %11 = vector.broadcast %cst_12 : f32 to vector<8x32xf32>
    %12 = arith.mulf %10, %11 : vector<8x32xf32>
    %c0_13 = arith.constant 0 : index
    %c0_14 = arith.constant 0 : index
    %13 = vector.load %arg6[%c0_13, %c0_14] : memref<32x32xf32, #tpu.memory_space<vmem>>, vector<32x32xf32>
    %cst_15 = arith.constant dense<0.000000e+00> : vector<8x32xf32>
    %14 = tpu.matmul %3, %13, %cst_15 {dimension_numbers = #tpu.dot_dimension_numbers<[1], [0], [0], [1], [0, 0, 1, 1], [], []>} : vector<8x32xf32>, vector<32x32xf32>, vector<8x32xf32> -> vector<8x32xf32>
    %c0_16 = arith.constant 0 : index
    %c0_17 = arith.constant 0 : index
    %15 = vector.load %arg7[%c0_16, %c0_17] : memref<1x32xf32, #tpu.memory_space<vmem>>, vector<1x32xf32>
    %16 = vector.broadcast %15 : vector<1x32xf32> to vector<8x32xf32>
    %17 = arith.addf %14, %16 : vector<8x32xf32>
    %c0_18 = arith.constant 0 : index
    %c0_19 = arith.constant 0 : index
    %18 = vector.load %arg8[%c0_18, %c0_19] : memref<32x32xf32, #tpu.memory_space<vmem>>, vector<32x32xf32>
    %cst_20 = arith.constant dense<0.000000e+00> : vector<8x32xf32>
    %19 = tpu.matmul %5, %18, %cst_20 {dimension_numbers = #tpu.dot_dimension_numbers<[1], [0], [0], [1], [0, 0, 1, 1], [], []>} : vector<8x32xf32>, vector<32x32xf32>, vector<8x32xf32> -> vector<8x32xf32>
    %c0_21 = arith.constant 0 : index
    %c0_22 = arith.constant 0 : index
    %20 = vector.load %arg9[%c0_21, %c0_22] : memref<1x32xf32, #tpu.memory_space<vmem>>, vector<1x32xf32>
    %21 = vector.broadcast %20 : vector<1x32xf32> to vector<8x32xf32>
    %22 = arith.addf %19, %21 : vector<8x32xf32>
    %23 = vector.extract_strided_slice %12 {offsets = [0, 0], sizes = [8, 8], strides = [1, 1]} : vector<8x32xf32> to vector<8x8xf32>
    %24 = vector.extract_strided_slice %17 {offsets = [0, 0], sizes = [8, 8], strides = [1, 1]} : vector<8x32xf32> to vector<8x8xf32>
    %25 = vector.extract_strided_slice %22 {offsets = [0, 0], sizes = [8, 8], strides = [1, 1]} : vector<8x32xf32> to vector<8x8xf32>
    %cst_23 = arith.constant dense<0.000000e+00> : vector<8x8xf32>
    %26 = tpu.matmul %23, %24, %cst_23 {dimension_numbers = #tpu.dot_dimension_numbers<[1], [1], [0], [0], [0, 0, 1, 0], [], []>} : vector<8x8xf32>, vector<8x8xf32>, vector<8x8xf32> -> vector<8x8xf32>
    %cst_24 = arith.constant dense<0xFF800000> : vector<8xf32>
    %27 = vector.multi_reduction <maximumf>, %26, %cst_24 [1] : vector<8x8xf32> to vector<8xf32>
    %28 = vector.shape_cast %27 : vector<8xf32> to vector<8x1xf32>
    %29 = vector.broadcast %28 : vector<8x1xf32> to vector<8x8xf32>
    %30 = arith.subf %26, %29 : vector<8x8xf32>
    %31 = math.exp %30 : vector<8x8xf32>
    %cst_25 = arith.constant dense<0.000000e+00> : vector<8xf32>
    %32 = vector.multi_reduction <add>, %31, %cst_25 [1] : vector<8x8xf32> to vector<8xf32>
    %33 = vector.shape_cast %32 : vector<8xf32> to vector<8x1xf32>
    %34 = tpu.reciprocal %33 {approx = true} : vector<8x1xf32> -> vector<8x1xf32>
    %35 = arith.mulf %33, %34 : vector<8x1xf32>
    %cst_26 = arith.constant 2.000000e+00 : f32
    %36 = vector.broadcast %cst_26 : f32 to vector<8x1xf32>
    %37 = arith.subf %36, %35 : vector<8x1xf32>
    %38 = arith.mulf %34, %37 : vector<8x1xf32>
    %39 = vector.broadcast %38 : vector<8x1xf32> to vector<8x8xf32>
    %40 = arith.mulf %31, %39 : vector<8x8xf32>
    %c0_27 = arith.constant 0 : index
    %c0_28 = arith.constant 0 : index
    %c0_29 = arith.constant 0 : index
    %c0_30 = arith.constant 0 : index
    %41 = vector.load %arg13[%c0_27, %c0_28, %c0_29, %c0_30] : memref<1x4x8x8xf32, #tpu.memory_space<vmem>>, vector<1x1x8x8xf32>
    %42 = vector.shape_cast %41 : vector<1x1x8x8xf32> to vector<8x8xf32>
    %43 = vector.shape_cast %40 : vector<8x8xf32> to vector<1x1x8x8xf32>
    tpu.vector_store %arg13[%c0_27, %c0_28, %c0_29, %c0_30], %43 {strides = array<i32>} : memref<1x4x8x8xf32, #tpu.memory_space<vmem>>, vector<1x1x8x8xf32>,
    %cst_31 = arith.constant dense<0.000000e+00> : vector<8x8xf32>
    %44 = tpu.matmul %40, %25, %cst_31 {dimension_numbers = #tpu.dot_dimension_numbers<[1], [0], [0], [1], [0, 0, 1, 1], [], []>} : vector<8x8xf32>, vector<8x8xf32>, vector<8x8xf32> -> vector<8x8xf32>
    %c0_32 = arith.constant 0 : index
    %c0_33 = arith.constant 0 : index
    %45 = vector.load %arg14[%c0_32, %c0_33] : memref<8x32xf32, #tpu.memory_space<vmem>>, vector<8x8xf32>
    tpu.vector_store %arg14[%c0_32, %c0_33], %44 {strides = array<i32>} : memref<8x32xf32, #tpu.memory_space<vmem>>, vector<8x8xf32>,
    %46 = vector.extract_strided_slice %12 {offsets = [0, 8], sizes = [8, 8], strides = [1, 1]} : vector<8x32xf32> to vector<8x8xf32>
    %47 = vector.extract_strided_slice %17 {offsets = [0, 8], sizes = [8, 8], strides = [1, 1]} : vector<8x32xf32> to vector<8x8xf32>
    %48 = vector.extract_strided_slice %22 {offsets = [0, 8], sizes = [8, 8], strides = [1, 1]} : vector<8x32xf32> to vector<8x8xf32>
    %cst_34 = arith.constant dense<0.000000e+00> : vector<8x8xf32>
    %49 = tpu.matmul %46, %47, %cst_34 {dimension_numbers = #tpu.dot_dimension_numbers<[1], [1], [0], [0], [0, 0, 1, 0], [], []>} : vector<8x8xf32>, vector<8x8xf32>, vector<8x8xf32> -> vector<8x8xf32>
    %cst_35 = arith.constant dense<0xFF800000> : vector<8xf32>
    %50 = vector.multi_reduction <maximumf>, %49, %cst_35 [1] : vector<8x8xf32> to vector<8xf32>
    %51 = vector.shape_cast %50 : vector<8xf32> to vector<8x1xf32>
    %52 = vector.broadcast %51 : vector<8x1xf32> to vector<8x8xf32>
    %53 = arith.subf %49, %52 : vector<8x8xf32>
    %54 = math.exp %53 : vector<8x8xf32>
    %cst_36 = arith.constant dense<0.000000e+00> : vector<8xf32>
    %55 = vector.multi_reduction <add>, %54, %cst_36 [1] : vector<8x8xf32> to vector<8xf32>
    %56 = vector.shape_cast %55 : vector<8xf32> to vector<8x1xf32>
    %57 = tpu.reciprocal %56 {approx = true} : vector<8x1xf32> -> vector<8x1xf32>
    %58 = arith.mulf %56, %57 : vector<8x1xf32>
    %cst_37 = arith.constant 2.000000e+00 : f32
    %59 = vector.broadcast %cst_37 : f32 to vector<8x1xf32>
    %60 = arith.subf %59, %58 : vector<8x1xf32>
    %61 = arith.mulf %57, %60 : vector<8x1xf32>
    %62 = vector.broadcast %61 : vector<8x1xf32> to vector<8x8xf32>
    %63 = arith.mulf %54, %62 : vector<8x8xf32>
    %c0_38 = arith.constant 0 : index
    %c1 = arith.constant 1 : index
    %c0_39 = arith.constant 0 : index
    %c0_40 = arith.constant 0 : index
    %64 = vector.load %arg13[%c0_38, %c1, %c0_39, %c0_40] : memref<1x4x8x8xf32, #tpu.memory_space<vmem>>, vector<1x1x8x8xf32>
    %65 = vector.shape_cast %64 : vector<1x1x8x8xf32> to vector<8x8xf32>
    %66 = vector.shape_cast %63 : vector<8x8xf32> to vector<1x1x8x8xf32>
    tpu.vector_store %arg13[%c0_38, %c1, %c0_39, %c0_40], %66 {strides = array<i32>} : memref<1x4x8x8xf32, #tpu.memory_space<vmem>>, vector<1x1x8x8xf32>,
    %cst_41 = arith.constant dense<0.000000e+00> : vector<8x8xf32>
    %67 = tpu.matmul %63, %48, %cst_41 {dimension_numbers = #tpu.dot_dimension_numbers<[1], [0], [0], [1], [0, 0, 1, 1], [], []>} : vector<8x8xf32>, vector<8x8xf32>, vector<8x8xf32> -> vector<8x8xf32>
    %c0_42 = arith.constant 0 : index
    %c8 = arith.constant 8 : index
    %68 = vector.load %arg14[%c0_42, %c8] : memref<8x32xf32, #tpu.memory_space<vmem>>, vector<8x8xf32>
    tpu.vector_store %arg14[%c0_42, %c8], %67 {strides = array<i32>} : memref<8x32xf32, #tpu.memory_space<vmem>>, vector<8x8xf32>,
    %69 = vector.extract_strided_slice %12 {offsets = [0, 16], sizes = [8, 8], strides = [1, 1]} : vector<8x32xf32> to vector<8x8xf32>
    %70 = vector.extract_strided_slice %17 {offsets = [0, 16], sizes = [8, 8], strides = [1, 1]} : vector<8x32xf32> to vector<8x8xf32>
    %71 = vector.extract_strided_slice %22 {offsets = [0, 16], sizes = [8, 8], strides = [1, 1]} : vector<8x32xf32> to vector<8x8xf32>
    %cst_43 = arith.constant dense<0.000000e+00> : vector<8x8xf32>
    %72 = tpu.matmul %69, %70, %cst_43 {dimension_numbers = #tpu.dot_dimension_numbers<[1], [1], [0], [0], [0, 0, 1, 0], [], []>} : vector<8x8xf32>, vector<8x8xf32>, vector<8x8xf32> -> vector<8x8xf32>
    %cst_44 = arith.constant dense<0xFF800000> : vector<8xf32>
    %73 = vector.multi_reduction <maximumf>, %72, %cst_44 [1] : vector<8x8xf32> to vector<8xf32>
    %74 = vector.shape_cast %73 : vector<8xf32> to vector<8x1xf32>
    %75 = vector.broadcast %74 : vector<8x1xf32> to vector<8x8xf32>
    %76 = arith.subf %72, %75 : vector<8x8xf32>
    %77 = math.exp %76 : vector<8x8xf32>
    %cst_45 = arith.constant dense<0.000000e+00> : vector<8xf32>
    %78 = vector.multi_reduction <add>, %77, %cst_45 [1] : vector<8x8xf32> to vector<8xf32>
    %79 = vector.shape_cast %78 : vector<8xf32> to vector<8x1xf32>
    %80 = tpu.reciprocal %79 {approx = true} : vector<8x1xf32> -> vector<8x1xf32>
    %81 = arith.mulf %79, %80 : vector<8x1xf32>
    %cst_46 = arith.constant 2.000000e+00 : f32
    %82 = vector.broadcast %cst_46 : f32 to vector<8x1xf32>
    %83 = arith.subf %82, %81 : vector<8x1xf32>
    %84 = arith.mulf %80, %83 : vector<8x1xf32>
    %85 = vector.broadcast %84 : vector<8x1xf32> to vector<8x8xf32>
    %86 = arith.mulf %77, %85 : vector<8x8xf32>
    %c0_47 = arith.constant 0 : index
    %c2 = arith.constant 2 : index
    %c0_48 = arith.constant 0 : index
    %c0_49 = arith.constant 0 : index
    %87 = vector.load %arg13[%c0_47, %c2, %c0_48, %c0_49] : memref<1x4x8x8xf32, #tpu.memory_space<vmem>>, vector<1x1x8x8xf32>
    %88 = vector.shape_cast %87 : vector<1x1x8x8xf32> to vector<8x8xf32>
    %89 = vector.shape_cast %86 : vector<8x8xf32> to vector<1x1x8x8xf32>
    tpu.vector_store %arg13[%c0_47, %c2, %c0_48, %c0_49], %89 {strides = array<i32>} : memref<1x4x8x8xf32, #tpu.memory_space<vmem>>, vector<1x1x8x8xf32>,
    %cst_50 = arith.constant dense<0.000000e+00> : vector<8x8xf32>
    %90 = tpu.matmul %86, %71, %cst_50 {dimension_numbers = #tpu.dot_dimension_numbers<[1], [0], [0], [1], [0, 0, 1, 1], [], []>} : vector<8x8xf32>, vector<8x8xf32>, vector<8x8xf32> -> vector<8x8xf32>
    %c0_51 = arith.constant 0 : index
    %c16 = arith.constant 16 : index
    %91 = vector.load %arg14[%c0_51, %c16] : memref<8x32xf32, #tpu.memory_space<vmem>>, vector<8x8xf32>
    tpu.vector_store %arg14[%c0_51, %c16], %90 {strides = array<i32>} : memref<8x32xf32, #tpu.memory_space<vmem>>, vector<8x8xf32>,
    %92 = vector.extract_strided_slice %12 {offsets = [0, 24], sizes = [8, 8], strides = [1, 1]} : vector<8x32xf32> to vector<8x8xf32>
    %93 = vector.extract_strided_slice %17 {offsets = [0, 24], sizes = [8, 8], strides = [1, 1]} : vector<8x32xf32> to vector<8x8xf32>
    %94 = vector.extract_strided_slice %22 {offsets = [0, 24], sizes = [8, 8], strides = [1, 1]} : vector<8x32xf32> to vector<8x8xf32>
    %cst_52 = arith.constant dense<0.000000e+00> : vector<8x8xf32>
    %95 = tpu.matmul %92, %93, %cst_52 {dimension_numbers = #tpu.dot_dimension_numbers<[1], [1], [0], [0], [0, 0, 1, 0], [], []>} : vector<8x8xf32>, vector<8x8xf32>, vector<8x8xf32> -> vector<8x8xf32>
    %cst_53 = arith.constant dense<0xFF800000> : vector<8xf32>
    %96 = vector.multi_reduction <maximumf>, %95, %cst_53 [1] : vector<8x8xf32> to vector<8xf32>
    %97 = vector.shape_cast %96 : vector<8xf32> to vector<8x1xf32>
    %98 = vector.broadcast %97 : vector<8x1xf32> to vector<8x8xf32>
    %99 = arith.subf %95, %98 : vector<8x8xf32>
    %100 = math.exp %99 : vector<8x8xf32>
    %cst_54 = arith.constant dense<0.000000e+00> : vector<8xf32>
    %101 = vector.multi_reduction <add>, %100, %cst_54 [1] : vector<8x8xf32> to vector<8xf32>
    %102 = vector.shape_cast %101 : vector<8xf32> to vector<8x1xf32>
    %103 = tpu.reciprocal %102 {approx = true} : vector<8x1xf32> -> vector<8x1xf32>
    %104 = arith.mulf %102, %103 : vector<8x1xf32>
    %cst_55 = arith.constant 2.000000e+00 : f32
    %105 = vector.broadcast %cst_55 : f32 to vector<8x1xf32>
    %106 = arith.subf %105, %104 : vector<8x1xf32>
    %107 = arith.mulf %103, %106 : vector<8x1xf32>
    %108 = vector.broadcast %107 : vector<8x1xf32> to vector<8x8xf32>
    %109 = arith.mulf %100, %108 : vector<8x8xf32>
    %c0_56 = arith.constant 0 : index
    %c3 = arith.constant 3 : index
    %c0_57 = arith.constant 0 : index
    %c0_58 = arith.constant 0 : index
    %110 = vector.load %arg13[%c0_56, %c3, %c0_57, %c0_58] : memref<1x4x8x8xf32, #tpu.memory_space<vmem>>, vector<1x1x8x8xf32>
    %111 = vector.shape_cast %110 : vector<1x1x8x8xf32> to vector<8x8xf32>
    %112 = vector.shape_cast %109 : vector<8x8xf32> to vector<1x1x8x8xf32>
    tpu.vector_store %arg13[%c0_56, %c3, %c0_57, %c0_58], %112 {strides = array<i32>} : memref<1x4x8x8xf32, #tpu.memory_space<vmem>>, vector<1x1x8x8xf32>,
    %cst_59 = arith.constant dense<0.000000e+00> : vector<8x8xf32>
    %113 = tpu.matmul %109, %94, %cst_59 {dimension_numbers = #tpu.dot_dimension_numbers<[1], [0], [0], [1], [0, 0, 1, 1], [], []>} : vector<8x8xf32>, vector<8x8xf32>, vector<8x8xf32> -> vector<8x8xf32>
    %c0_60 = arith.constant 0 : index
    %c24 = arith.constant 24 : index
    %114 = vector.load %arg14[%c0_60, %c24] : memref<8x32xf32, #tpu.memory_space<vmem>>, vector<8x8xf32>
    tpu.vector_store %arg14[%c0_60, %c24], %113 {strides = array<i32>} : memref<8x32xf32, #tpu.memory_space<vmem>>, vector<8x8xf32>,
    %c0_61 = arith.constant 0 : index
    %c0_62 = arith.constant 0 : index
    %115 = vector.load %arg14[%c0_61, %c0_62] : memref<8x32xf32, #tpu.memory_space<vmem>>, vector<8x32xf32>
    %c0_63 = arith.constant 0 : index
    %c0_64 = arith.constant 0 : index
    %116 = vector.load %arg10[%c0_63, %c0_64] : memref<32x32xf32, #tpu.memory_space<vmem>>, vector<32x32xf32>
    %cst_65 = arith.constant dense<0.000000e+00> : vector<8x32xf32>
    %117 = tpu.matmul %115, %116, %cst_65 {dimension_numbers = #tpu.dot_dimension_numbers<[1], [0], [0], [1], [0, 0, 1, 1], [], []>} : vector<8x32xf32>, vector<32x32xf32>, vector<8x32xf32> -> vector<8x32xf32>
    %c0_66 = arith.constant 0 : index
    %c0_67 = arith.constant 0 : index
    %118 = vector.load %arg11[%c0_66, %c0_67] : memref<1x32xf32, #tpu.memory_space<vmem>>, vector<1x32xf32>
    %119 = vector.broadcast %118 : vector<1x32xf32> to vector<8x32xf32>
    %120 = arith.addf %117, %119 : vector<8x32xf32>
    %c0_68 = arith.constant 0 : index
    %c0_69 = arith.constant 0 : index
    %c0_70 = arith.constant 0 : index
    %121 = vector.load %arg12[%c0_68, %c0_69, %c0_70] : memref<1x8x32xf32, #tpu.memory_space<vmem>>, vector<1x8x32xf32>
    %122 = vector.shape_cast %121 : vector<1x8x32xf32> to vector<8x32xf32>
    %123 = vector.shape_cast %120 : vector<8x32xf32> to vector<1x8x32xf32>
    tpu.vector_store %arg12[%c0_68, %c0_69, %c0_70], %123 {strides = array<i32>} : memref<1x8x32xf32, #tpu.memory_space<vmem>>, vector<1x8x32xf32>,
    return
  }
  func.func @transform_0(%arg0: i32) -> (i32, i32, i32) {
    %c0_i32 = arith.constant 0 : i32
    %c0_i32_0 = arith.constant 0 : i32
    %c0_i32_1 = arith.constant 0 : i32
    return %arg0, %c0_i32, %c0_i32_0 : i32, i32, i32
  }
  func.func @transform_1(%arg0: i32) -> (i32, i32, i32) {
    %c0_i32 = arith.constant 0 : i32
    %c0_i32_0 = arith.constant 0 : i32
    %c0_i32_1 = arith.constant 0 : i32
    return %arg0, %c0_i32, %c0_i32_0 : i32, i32, i32
  }
  func.func @transform_2(%arg0: i32) -> (i32, i32, i32) {
    %c0_i32 = arith.constant 0 : i32
    %c0_i32_0 = arith.constant 0 : i32
    %c0_i32_1 = arith.constant 0 : i32
    return %arg0, %c0_i32, %c0_i32_0 : i32, i32, i32
  }
  func.func @transform_3(%arg0: i32) -> (i32, i32) {
    %c0_i32 = arith.constant 0 : i32
    %c0_i32_0 = arith.constant 0 : i32
    %c0_i32_1 = arith.constant 0 : i32
    return %c0_i32, %c0_i32_0 : i32, i32
  }
  func.func @transform_4(%arg0: i32) -> (i32, i32) {
    %c0_i32 = arith.constant 0 : i32
    %c0_i32_0 = arith.constant 0 : i32
    %c0_i32_1 = arith.constant 0 : i32
    return %c0_i32, %c0_i32_0 : i32, i32
  }
  func.func @transform_5(%arg0: i32) -> (i32, i32) {
    %c0_i32 = arith.constant 0 : i32
    %c0_i32_0 = arith.constant 0 : i32
    %c0_i32_1 = arith.constant 0 : i32
    return %c0_i32, %c0_i32_0 : i32, i32
  }
  func.func @transform_6(%arg0: i32) -> (i32, i32) {
    %c0_i32 = arith.constant 0 : i32
    %c0_i32_0 = arith.constant 0 : i32
    %c0_i32_1 = arith.constant 0 : i32
    return %c0_i32, %c0_i32_0 : i32, i32
  }
  func.func @transform_7(%arg0: i32) -> (i32, i32) {
    %c0_i32 = arith.constant 0 : i32
    %c0_i32_0 = arith.constant 0 : i32
    %c0_i32_1 = arith.constant 0 : i32
    return %c0_i32, %c0_i32_0 : i32, i32
  }
  func.func @transform_8(%arg0: i32) -> (i32, i32) {
    %c0_i32 = arith.constant 0 : i32
    %c0_i32_0 = arith.constant 0 : i32
    %c0_i32_1 = arith.constant 0 : i32
    return %c0_i32, %c0_i32_0 : i32, i32
  }
  func.func @transform_9(%arg0: i32) -> (i32, i32) {
    %c0_i32 = arith.constant 0 : i32
    %c0_i32_0 = arith.constant 0 : i32
    %c0_i32_1 = arith.constant 0 : i32
    return %c0_i32, %c0_i32_0 : i32, i32
  }
  func.func @transform_10(%arg0: i32) -> (i32, i32) {
    %c0_i32 = arith.constant 0 : i32
    %c0_i32_0 = arith.constant 0 : i32
    %c0_i32_1 = arith.constant 0 : i32
    return %c0_i32, %c0_i32_0 : i32, i32
  }
  func.func @transform_11(%arg0: i32) -> (i32, i32, i32) {
    %c0_i32 = arith.constant 0 : i32
    %c0_i32_0 = arith.constant 0 : i32
    %c0_i32_1 = arith.constant 0 : i32
    return %arg0, %c0_i32, %c0_i32_0 : i32, i32, i32
  }
  func.func @transform_12(%arg0: i32) -> (i32, i32, i32, i32) {
    %c0_i32 = arith.constant 0 : i32
    %c0_i32_0 = arith.constant 0 : i32
    %c0_i32_1 = arith.constant 0 : i32
    %c0_i32_2 = arith.constant 0 : i32
    return %arg0, %c0_i32, %c0_i32_0, %c0_i32_1 : i32, i32, i32, i32
  }
}

</mosaic_0001>

<llo_original>
// kernel: tpu_custom_call.1
$region0: #{tpu_custom_call.1}
  #allocation0 [shape = 'u32[]', space=smem, size = 0x4, offset = 0x4, fixed_abs, tag = 'smem constant byte address 0x4 - core index']
  #allocation1 [shape = 'u32[144,128]{1,0:T(1,128)}', space=vmem, size = 0x12000, scoped, tag = 'internal scratch']
  #allocation2 [shape = 'f32[8,32]{1,0:T(8,128)}', space=vmem, size = 0x1000, scoped, tag = 'scratch operand']
  %s0 = inlined_call_operand.hbm [shape: f32[2,8,32], index: 0, kind: input, shape index: {}]
  %s1 = inlined_call_operand.hbm [shape: f32[2,8,32], index: 1, kind: input, shape index: {}]
  %s2 = inlined_call_operand.hbm [shape: f32[2,8,32], index: 2, kind: input, shape index: {}]
  %s3 = inlined_call_operand.hbm [shape: f32[32,32], index: 3, kind: input, shape index: {}]
  %s4 = inlined_call_operand.vmem [shape: f32[1,32], index: 4, kind: input, shape index: {}]
  %s5 = inlined_call_operand.hbm [shape: f32[32,32], index: 5, kind: input, shape index: {}]
  %s6 = inlined_call_operand.vmem [shape: f32[1,32], index: 6, kind: input, shape index: {}]
  %s7 = inlined_call_operand.hbm [shape: f32[32,32], index: 7, kind: input, shape index: {}]
  %s8 = inlined_call_operand.hbm [shape: f32[1,32], index: 8, kind: input, shape index: {}]
  %s9 = inlined_call_operand.vmem [shape: f32[32,32], index: 9, kind: input, shape index: {}]
  %s10 = inlined_call_operand.vmem [shape: f32[1,32], index: 10, kind: input, shape index: {}]
  %s11 = inlined_call_operand.hbm [shape: f32[2,8,32], index: 11, kind: output, shape index: {0}]
  %s12 = inlined_call_operand.hbm [shape: f32[2,4,8,8], index: 12, kind: output, shape index: {1}]
  %13 = xla_tuple %s11, %s12
  %s14 = sld [smem:[#allocation0]]
  $region113: #{tpu_custom_call.1} parent=0
    _
  %s16 = ssub.s32 1, %s14
  %s17 = scalar_select 0, %s16, %s14
  $region1: #{tpu_custom_call.1} parent=0
    #allocation3 [shape = 'u8[8192]{0}', space=vmem, size = 0x2000, scoped, tag = 'input window, operand 0']
    #allocation4 [shape = 's32[2]{0}', space=sflag, size = 0x8, scoped, tag = 'scoped memory for tpu_custom_call.1']
    #allocation5 [shape = 's32[2]{0}', space=sflag, size = 0x8, scoped, tag = 'scoped memory for tpu_custom_call.1']
    #allocation6 [shape = 'u8[8192]{0}', space=vmem, size = 0x2000, scoped, tag = 'input window, operand 1']
    #allocation7 [shape = 's32[2]{0}', space=sflag, size = 0x8, scoped, tag = 'scoped memory for tpu_custom_call.1']
    #allocation8 [shape = 'u8[8192]{0}', space=vmem, size = 0x2000, scoped, tag = 'input window, operand 2']
    #allocation9 [shape = 'u8[16384]{0}', space=vmem, size = 0x4000, scoped, tag = 'input window, operand 3, single buffered']
    #allocation10 [shape = 's32[1]{0}', space=sflag, size = 0x4, scoped, tag = 'scoped memory for tpu_custom_call.1']
    #allocation11 [shape = 'u8[16384]{0}', space=vmem, size = 0x4000, scoped, tag = 'input window, operand 5, single buffered']
    #allocation12 [shape = 'u8[16384]{0}', space=vmem, size = 0x4000, scoped, tag = 'input window, operand 7, single buffered']
    #allocation13 [shape = 's32[1]{0}', space=sflag, size = 0x4, scoped, tag = 'scoped memory for tpu_custom_call.1']
    #allocation14 [shape = 'u8[512]{0}', space=vmem, size = 0x400, scoped, tag = 'input window, operand 8, single buffered']
    #allocation15 [shape = 'u8[8192]{0}', space=vmem, size = 0x2000, scoped, tag = 'output window, operand 0']
    #allocation16 [shape = 'u8[32768]{0}', space=vmem, size = 0x8000, scoped, tag = 'output window, operand 1']
    #allocation17 [shape = 's32[2]{0}', space=sflag, size = 0x8, scoped, tag = 'scoped memory for tpu_custom_call.1']
    %18 = vsyncpa [#allocation4], 0
    %s19 = scalar_lea.sflag [#allocation4], 1
    %20 = vsyncpa %s19, 0
    %21 = vsyncpa [#allocation7], 0
    %s22 = scalar_lea.sflag [#allocation7], 1
    %23 = vsyncpa %s22, 0
    %24 = vsyncpa [#allocation10], 0
    %25 = vsyncpa [#allocation13], 0
    %26 = vsyncpa [#allocation5], 0
    %s27 = scalar_lea.sflag [#allocation5], 1
    %28 = vsyncpa %s27, 0
    %29 = vsyncpa [#allocation17], 0
    %s30 = scalar_lea.sflag [#allocation17], 1
    %31 = vsyncpa %s30, 0
    loop: start=0, step=1, limit=4
    $region2: #{tpu_custom_call.1} parent=1 // loop_pre_header
      _
    $region3: #{tpu_custom_call.1} parent=1 // loop_header
      %s33 = sphi 0, %s37
      %p34 = scmp.ge.s32.totalorder %s33, 4
      %s43 = sphi 0, %s45
      %s46 = sphi 0, %s43
      %s47 = sphi 0, %s46
      %s63 = sphi 0, %s47
      %s69 = sphi 0, %s71
      %s72 = sphi 0, %s69
      %s73 = sphi 0, %s72
      %s89 = sphi 0, %s73
      %s95 = sphi 0, %s97
      %s98 = sphi 0, %s95
      %s99 = sphi 0, %s98
      %s115 = sphi 0, %s99
      %s119 = sphi 0, %s119
      %s121 = sphi 0, %s119
      %s122 = sphi 0, %s121
      %s136 = sphi 0, %s122
      %s140 = sphi 0, %s140
      %s142 = sphi 0, %s140
      %s143 = sphi 0, %s142
      %s157 = sphi 0, %s143
      %s161 = sphi 0, %s161
      %s163 = sphi 0, %s161
      %s164 = sphi 0, %s163
      %s178 = sphi 0, %s164
      %s182 = sphi 0, %s182
      %s184 = sphi 0, %s182
      %s185 = sphi 0, %s184
      %s199 = sphi 0, %s185
      %s203 = sphi 0, %s203
      %s205 = sphi 0, %s203
      %s206 = sphi 0, %s205
      %s220 = sphi 0, %s206
      %s224 = sphi 0, %s224
      %s226 = sphi 0, %s224
      %s227 = sphi 0, %s226
      %s241 = sphi 0, %s227
      %s245 = sphi 0, %s245
      %s247 = sphi 0, %s245
      %s248 = sphi 0, %s247
      %s262 = sphi 0, %s248
      %s266 = sphi 0, %s266
      %s268 = sphi 0, %s266
      %s269 = sphi 0, %s268
      %s283 = sphi 0, %s269
      %s289 = sphi 0, %s291
      %s292 = sphi 0, %s289
      %s293 = sphi 0, %s292
      %s309 = sphi 0, %s293
      %s315 = sphi 0, %s317
      %s318 = sphi 0, %s315
      %s319 = sphi 0, %s318
      %s335 = sphi 0, %s319
    $region4: #{tpu_custom_call.1} parent=1 // loop_header_branch
      %36 = sbr.rel (%p34) target = $region8
    $region5: #{tpu_custom_call.1} parent=1 // loop_body
      %s38 = ssub.s32 %s33, 1
      %s39 = ssub.s32 %s33, 2
      %s40 = sadd.s32 %s33, 1
      %s41 = ssub.s32 %s33, %s40
      %p42 = scmp.eq.s32.totalorder %s41, 0
      %s44 = sadd.s32 %s43, 1
      %s45 = scalar_select %p42, %s43, %s44
      %p48 = pneg %p42
      %p49 = scmp.eq.s32.totalorder %s33, 1
      %p50 = por %p48, %p49
      %p51 = scmp.ne.s32.totalorder %s43, %s46
      %p52 = scmp.eq.s32.totalorder %s33, 0
      %p53 = por %p51, %p52
      %p54 = scmp.ne.s32.totalorder %s43, %s46
      %p55 = scmp.eq.s32.totalorder %s38, 1
      %p56 = por %p54, %p55
      %p57 = scmp.ne.s32.totalorder %s46, %s47
      %p58 = scmp.eq.s32.totalorder %s38, 0
      %p59 = por %p57, %p58
      %p60 = scmp.ne.s32.totalorder %s46, %s47
      %p61 = scmp.eq.s32.totalorder %s39, 1
      %p62 = por %p60, %p61
      %p64 = scmp.ne.s32.totalorder %s47, %s63
      %p65 = scmp.eq.s32.totalorder %s39, 0
      %p66 = por %p64, %p65
      %s67 = ssub.s32 %s33, %s40
      %p68 = scmp.eq.s32.totalorder %s67, 0
      %s70 = sadd.s32 %s69, 1
      %s71 = scalar_select %p68, %s69, %s70
      %p74 = pneg %p68
      %p75 = scmp.eq.s32.totalorder %s33, 1
      %p76 = por %p74, %p75
      %p77 = scmp.ne.s32.totalorder %s69, %s72
      %p78 = scmp.eq.s32.totalorder %s33, 0
      %p79 = por %p77, %p78
      %p80 = scmp.ne.s32.totalorder %s69, %s72
      %p81 = scmp.eq.s32.totalorder %s38, 1
      %p82 = por %p80, %p81
      %p83 = scmp.ne.s32.totalorder %s72, %s73
      %p84 = scmp.eq.s32.totalorder %s38, 0
      %p85 = por %p83, %p84
      %p86 = scmp.ne.s32.totalorder %s72, %s73
      %p87 = scmp.eq.s32.totalorder %s39, 1
      %p88 = por %p86, %p87
      %p90 = scmp.ne.s32.totalorder %s73, %s89
      %p91 = scmp.eq.s32.totalorder %s39, 0
      %p92 = por %p90, %p91
      %s93 = ssub.s32 %s33, %s40
      %p94 = scmp.eq.s32.totalorder %s93, 0
      %s96 = sadd.s32 %s95, 1
      %s97 = scalar_select %p94, %s95, %s96
      %p100 = pneg %p94
      %p101 = scmp.eq.s32.totalorder %s33, 1
      %p102 = por %p100, %p101
      %p103 = scmp.ne.s32.totalorder %s95, %s98
      %p104 = scmp.eq.s32.totalorder %s33, 0
      %p105 = por %p103, %p104
      %p106 = scmp.ne.s32.totalorder %s95, %s98
      %p107 = scmp.eq.s32.totalorder %s38, 1
      %p108 = por %p106, %p107
      %p109 = scmp.ne.s32.totalorder %s98, %s99
      %p110 = scmp.eq.s32.totalorder %s38, 0
      %p111 = por %p109, %p110
      %p112 = scmp.ne.s32.totalorder %s98, %s99
      %p113 = scmp.eq.s32.totalorder %s39, 1
      %p114 = por %p112, %p113
      %p116 = scmp.ne.s32.totalorder %s99, %s115
      %p117 = scmp.eq.s32.totalorder %s39, 0
      %p118 = por %p116, %p117
      %s120 = sadd.s32 %s119, 1
      %p123 = scmp.eq.s32.totalorder %s33, 1
      %p124 = scmp.ne.s32.totalorder %s119, %s121
      %p125 = scmp.eq.s32.totalorder %s33, 0
      %p126 = por %p124, %p125
      %p127 = scmp.ne.s32.totalorder %s119, %s121
      %p128 = scmp.eq.s32.totalorder %s38, 1
      %p129 = por %p127, %p128
      %p130 = scmp.ne.s32.totalorder %s121, %s122
      %p131 = scmp.eq.s32.totalorder %s38, 0
      %p132 = por %p130, %p131
      %p133 = scmp.ne.s32.totalorder %s121, %s122
      %p134 = scmp.eq.s32.totalorder %s39, 1
      %p135 = por %p133, %p134
      %p137 = scmp.ne.s32.totalorder %s122, %s136
      %p138 = scmp.eq.s32.totalorder %s39, 0
      %p139 = por %p137, %p138
      %s141 = sadd.s32 %s140, 1
      %p144 = scmp.eq.s32.totalorder %s33, 1
      %p145 = scmp.ne.s32.totalorder %s140, %s142
      %p146 = scmp.eq.s32.totalorder %s33, 0
      %p147 = por %p145, %p146
      %p148 = scmp.ne.s32.totalorder %s140, %s142
      %p149 = scmp.eq.s32.totalorder %s38, 1
      %p150 = por %p148, %p149
      %p151 = scmp.ne.s32.totalorder %s142, %s143
      %p152 = scmp.eq.s32.totalorder %s38, 0
      %p153 = por %p151, %p152
      %p154 = scmp.ne.s32.totalorder %s142, %s143
      %p155 = scmp.eq.s32.totalorder %s39, 1
      %p156 = por %p154, %p155
      %p158 = scmp.ne.s32.totalorder %s143, %s157
      %p159 = scmp.eq.s32.totalorder %s39, 0
      %p160 = por %p158, %p159
      %s162 = sadd.s32 %s161, 1
      %p165 = scmp.eq.s32.totalorder %s33, 1
      %p166 = scmp.ne.s32.totalorder %s161, %s163
      %p167 = scmp.eq.s32.totalorder %s33, 0
      %p168 = por %p166, %p167
      %p169 = scmp.ne.s32.totalorder %s161, %s163
      %p170 = scmp.eq.s32.totalorder %s38, 1
      %p171 = por %p169, %p170
      %p172 = scmp.ne.s32.totalorder %s163, %s164
      %p173 = scmp.eq.s32.totalorder %s38, 0
      %p174 = por %p172, %p173
      %p175 = scmp.ne.s32.totalorder %s163, %s164
      %p176 = scmp.eq.s32.totalorder %s39, 1
      %p177 = por %p175, %p176
      %p179 = scmp.ne.s32.totalorder %s164, %s178
      %p180 = scmp.eq.s32.totalorder %s39, 0
      %p181 = por %p179, %p180
      %s183 = sadd.s32 %s182, 1
      %p186 = scmp.eq.s32.totalorder %s33, 1
      %p187 = scmp.ne.s32.totalorder %s182, %s184
      %p188 = scmp.eq.s32.totalorder %s33, 0
      %p189 = por %p187, %p188
      %p190 = scmp.ne.s32.totalorder %s182, %s184
      %p191 = scmp.eq.s32.totalorder %s38, 1
      %p192 = por %p190, %p191
      %p193 = scmp.ne.s32.totalorder %s184, %s185
      %p194 = scmp.eq.s32.totalorder %s38, 0
      %p195 = por %p193, %p194
      %p196 = scmp.ne.s32.totalorder %s184, %s185
      %p197 = scmp.eq.s32.totalorder %s39, 1
      %p198 = por %p196, %p197
      %p200 = scmp.ne.s32.totalorder %s185, %s199
      %p201 = scmp.eq.s32.totalorder %s39, 0
      %p202 = por %p200, %p201
      %s204 = sadd.s32 %s203, 1
      %p207 = scmp.eq.s32.totalorder %s33, 1
      %p208 = scmp.ne.s32.totalorder %s203, %s205
      %p209 = scmp.eq.s32.totalorder %s33, 0
      %p210 = por %p208, %p209
      %p211 = scmp.ne.s32.totalorder %s203, %s205
      %p212 = scmp.eq.s32.totalorder %s38, 1
      %p213 = por %p211, %p212
      %p214 = scmp.ne.s32.totalorder %s205, %s206
      %p215 = scmp.eq.s32.totalorder %s38, 0
      %p216 = por %p214, %p215
      %p217 = scmp.ne.s32.totalorder %s205, %s206
      %p218 = scmp.eq.s32.totalorder %s39, 1
      %p219 = por %p217, %p218
      %p221 = scmp.ne.s32.totalorder %s206, %s220
      %p222 = scmp.eq.s32.totalorder %s39, 0
      %p223 = por %p221, %p222
      %s225 = sadd.s32 %s224, 1
      %p228 = scmp.eq.s32.totalorder %s33, 1
      %p229 = scmp.ne.s32.totalorder %s224, %s226
      %p230 = scmp.eq.s32.totalorder %s33, 0
      %p231 = por %p229, %p230
      %p232 = scmp.ne.s32.totalorder %s224, %s226
      %p233 = scmp.eq.s32.totalorder %s38, 1
      %p234 = por %p232, %p233
      %p235 = scmp.ne.s32.totalorder %s226, %s227
      %p236 = scmp.eq.s32.totalorder %s38, 0
      %p237 = por %p235, %p236
      %p238 = scmp.ne.s32.totalorder %s226, %s227
      %p239 = scmp.eq.s32.totalorder %s39, 1
      %p240 = por %p238, %p239
      %p242 = scmp.ne.s32.totalorder %s227, %s241
      %p243 = scmp.eq.s32.totalorder %s39, 0
      %p244 = por %p242, %p243
      %s246 = sadd.s32 %s245, 1
      %p249 = scmp.eq.s32.totalorder %s33, 1
      %p250 = scmp.ne.s32.totalorder %s245, %s247
      %p251 = scmp.eq.s32.totalorder %s33, 0
      %p252 = por %p250, %p251
      %p253 = scmp.ne.s32.totalorder %s245, %s247
      %p254 = scmp.eq.s32.totalorder %s38, 1
      %p255 = por %p253, %p254
      %p256 = scmp.ne.s32.totalorder %s247, %s248
      %p257 = scmp.eq.s32.totalorder %s38, 0
      %p258 = por %p256, %p257
      %p259 = scmp.ne.s32.totalorder %s247, %s248
      %p260 = scmp.eq.s32.totalorder %s39, 1
      %p261 = por %p259, %p260
      %p263 = scmp.ne.s32.totalorder %s248, %s262
      %p264 = scmp.eq.s32.totalorder %s39, 0
      %p265 = por %p263, %p264
      %s267 = sadd.s32 %s266, 1
      %p270 = scmp.eq.s32.totalorder %s33, 1
      %p271 = scmp.ne.s32.totalorder %s266, %s268
      %p272 = scmp.eq.s32.totalorder %s33, 0
      %p273 = por %p271, %p272
      %p274 = scmp.ne.s32.totalorder %s266, %s268
      %p275 = scmp.eq.s32.totalorder %s38, 1
      %p276 = por %p274, %p275
      %p277 = scmp.ne.s32.totalorder %s268, %s269
      %p278 = scmp.eq.s32.totalorder %s38, 0
      %p279 = por %p277, %p278
      %p280 = scmp.ne.s32.totalorder %s268, %s269
      %p281 = scmp.eq.s32.totalorder %s39, 1
      %p282 = por %p280, %p281
      %p284 = scmp.ne.s32.totalorder %s269, %s283
      %p285 = scmp.eq.s32.totalorder %s39, 0
      %p286 = por %p284, %p285
      %s287 = ssub.s32 %s33, %s40
      %p288 = scmp.eq.s32.totalorder %s287, 0
      %s290 = sadd.s32 %s289, 1
      %s291 = scalar_select %p288, %s289, %s290
      %p294 = pneg %p288
      %p295 = scmp.eq.s32.totalorder %s33, 1
      %p296 = por %p294, %p295
      %p297 = scmp.ne.s32.totalorder %s289, %s292
      %p298 = scmp.eq.s32.totalorder %s33, 0
      %p299 = por %p297, %p298
      %p300 = scmp.ne.s32.totalorder %s289, %s292
      %p301 = scmp.eq.s32.totalorder %s38, 1
      %p302 = por %p300, %p301
      %p303 = scmp.ne.s32.totalorder %s292, %s293
      %p304 = scmp.eq.s32.totalorder %s38, 0
      %p305 = por %p303, %p304
      %p306 = scmp.ne.s32.totalorder %s292, %s293
      %p307 = scmp.eq.s32.totalorder %s39, 1
      %p308 = por %p306, %p307
      %p310 = scmp.ne.s32.totalorder %s293, %s309
      %p311 = scmp.eq.s32.totalorder %s39, 0
      %p312 = por %p310, %p311
      %s313 = ssub.s32 %s33, %s40
      %p314 = scmp.eq.s32.totalorder %s313, 0
      %s316 = sadd.s32 %s315, 1
      %s317 = scalar_select %p314, %s315, %s316
      %p320 = pneg %p314
      %p321 = scmp.eq.s32.totalorder %s33, 1
      %p322 = por %p320, %p321
      %p323 = scmp.ne.s32.totalorder %s315, %s318
      %p324 = scmp.eq.s32.totalorder %s33, 0
      %p325 = por %p323, %p324
      %p326 = scmp.ne.s32.totalorder %s315, %s318
      %p327 = scmp.eq.s32.totalorder %s38, 1
      %p328 = por %p326, %p327
      %p329 = scmp.ne.s32.totalorder %s318, %s319
      %p330 = scmp.eq.s32.totalorder %s38, 0
      %p331 = por %p329, %p330
      %p332 = scmp.ne.s32.totalorder %s318, %s319
      %p333 = scmp.eq.s32.totalorder %s39, 1
      %p334 = por %p332, %p333
      %p336 = scmp.ne.s32.totalorder %s319, %s335
      %p337 = scmp.eq.s32.totalorder %s39, 0
      %p338 = por %p336, %p337
      %p339 = scmp.le.s32.totalorder 1, %s33
      %p340 = scmp.lt.s32.totalorder %s33, 3
      %p341 = pnand %p339, %p340
      %p342 = pneg %p341
      // Predicated region
      $region9: #{tpu_custom_call.1} parent=5 // pred_check
        _
      $region10: #{tpu_custom_call.1} parent=5 // pred_check_branch
        %344 = sbr.rel (%p341) target = $region12
      $region11: #{tpu_custom_call.1} parent=5 // pred_region
        %s345 = ssub.s32 %s33, 1
        // Predicated region
        $region13: #{tpu_custom_call.1} parent=11 // pred_check
          %p346 = pneg %p132
        $region14: #{tpu_custom_call.1} parent=11 // pred_check_branch
          %348 = sbr.rel (%p346) target = $region16
        $region15: #{tpu_custom_call.1} parent=11 // pred_region
          %s350 = ssub.s32 512, 512
          %351 = vsyncadd [#allocation10], %s350
          %s352 = sshll.u32 [#allocation9], 4
          %s353 = int_to_ptr.vmem [resolvable:$true] %s352
          %358 = dma.hbm_to_vmem [thread:$0]  %s3, 512, %s353, [#allocation10], 128, 128, 8
        $region16: #{tpu_custom_call.1} parent=11 // pred_fallthru
          _
        // Predicated region
        $region17: #{tpu_custom_call.1} parent=11 // pred_check
          %p359 = pneg %p153
        $region18: #{tpu_custom_call.1} parent=11 // pred_check_branch
          %361 = sbr.rel (%p359) target = $region20
        $region19: #{tpu_custom_call.1} parent=11 // pred_region
          _
        $region20: #{tpu_custom_call.1} parent=11 // pred_fallthru
          _
        // Predicated region
        $region21: #{tpu_custom_call.1} parent=11 // pred_check
          %p362 = pneg %p174
        $region22: #{tpu_custom_call.1} parent=11 // pred_check_branch
          %364 = sbr.rel (%p362) target = $region24
        $region23: #{tpu_custom_call.1} parent=11 // pred_region
          %s366 = ssub.s32 512, 512
          %367 = vsyncadd [#allocation10], %s366
          %s368 = sshll.u32 [#allocation11], 4
          %s369 = int_to_ptr.vmem [resolvable:$true] %s368
          %374 = dma.hbm_to_vmem [thread:$0]  %s5, 512, %s369, [#allocation10], 128, 128, 8
        $region24: #{tpu_custom_call.1} parent=11 // pred_fallthru
          _
        // Predicated region
        $region25: #{tpu_custom_call.1} parent=11 // pred_check
          %p375 = pneg %p195
        $region26: #{tpu_custom_call.1} parent=11 // pred_check_branch
          %377 = sbr.rel (%p375) target = $region28
        $region27: #{tpu_custom_call.1} parent=11 // pred_region
          _
        $region28: #{tpu_custom_call.1} parent=11 // pred_fallthru
          _
        // Predicated region
        $region29: #{tpu_custom_call.1} parent=11 // pred_check
          %p378 = pneg %p216
        $region30: #{tpu_custom_call.1} parent=11 // pred_check_branch
          %380 = sbr.rel (%p378) target = $region32
        $region31: #{tpu_custom_call.1} parent=11 // pred_region
          %s382 = ssub.s32 512, 512
          %383 = vsyncadd [#allocation13], %s382
          %s384 = sshll.u32 [#allocation12], 4
          %s385 = int_to_ptr.vmem [resolvable:$true] %s384
          %390 = dma.hbm_to_vmem [thread:$0]  %s7, 512, %s385, [#allocation13], 128, 128, 8
        $region32: #{tpu_custom_call.1} parent=11 // pred_fallthru
          _
        // Predicated region
        $region33: #{tpu_custom_call.1} parent=11 // pred_check
          %p391 = pneg %p237
        $region34: #{tpu_custom_call.1} parent=11 // pred_check_branch
          %393 = sbr.rel (%p391) target = $region36
        $region35: #{tpu_custom_call.1} parent=11 // pred_region
          %s395 = ssub.s32 16, 16
          %396 = vsyncadd [#allocation13], %s395
          %s398 = sshll.u32 [#allocation14], 4
          %s399 = int_to_ptr.vmem [resolvable:$true] %s398
          %401 = dma.hbm_to_vmem [thread:$0]  %s8, 16, %s399, [#allocation13]
        $region36: #{tpu_custom_call.1} parent=11 // pred_fallthru
          _
        // Predicated region
        $region37: #{tpu_custom_call.1} parent=11 // pred_check
          %p402 = pneg %p258
        $region38: #{tpu_custom_call.1} parent=11 // pred_check_branch
          %404 = sbr.rel (%p402) target = $region40
        $region39: #{tpu_custom_call.1} parent=11 // pred_region
          _
        $region40: #{tpu_custom_call.1} parent=11 // pred_fallthru
          _
        // Predicated region
        $region41: #{tpu_custom_call.1} parent=11 // pred_check
          %p405 = pneg %p279
        $region42: #{tpu_custom_call.1} parent=11 // pred_check_branch
          %407 = sbr.rel (%p405) target = $region44
        $region43: #{tpu_custom_call.1} parent=11 // pred_region
          _
        $region44: #{tpu_custom_call.1} parent=11 // pred_fallthru
          _
      $region12: #{tpu_custom_call.1} parent=5 // pred_fallthru
        _
      %p408 = scmp.lt.s32.totalorder %s33, 2
      // Predicated region
      $region45: #{tpu_custom_call.1} parent=5 // pred_check
        %p409 = pneg %p408
      $region46: #{tpu_custom_call.1} parent=5 // pred_check_branch
        %411 = sbr.rel (%p409) target = $region48
      $region47: #{tpu_custom_call.1} parent=5 // pred_region
        // Predicated region
        $region49: #{tpu_custom_call.1} parent=47 // pred_check
          %p412 = pneg %p53
        $region50: #{tpu_custom_call.1} parent=47 // pred_check_branch
          %414 = sbr.rel (%p412) target = $region52
        $region51: #{tpu_custom_call.1} parent=47 // pred_region
          %s415 = sand.u32 %s43, 1
          %s416 = scalar_lea.sflag [#allocation4], %s415
          %s417 = sand.u32 %s43, 1
          %s418 = smul.addr %s417, 8
          %s419 = scalar_lea.vmem [#allocation3], %s418
          %s421 = ssub.s32 128, 128
          %422 = vsyncadd %s416, %s421
          %s423 = smul.addr %s33, 128
          %s424 = scalar_lea.hbm %s0, %s423
          %s426 = sshll.u32 %s419, 4
          %s427 = int_to_ptr.vmem [resolvable:$true] %s426
          %429 = dma.hbm_to_vmem [thread:$0]  %s424, 128, %s427, %s416
        $region52: #{tpu_custom_call.1} parent=47 // pred_fallthru
          _
        // Predicated region
        $region53: #{tpu_custom_call.1} parent=47 // pred_check
          %p430 = pneg %p79
        $region54: #{tpu_custom_call.1} parent=47 // pred_check_branch
          %432 = sbr.rel (%p430) target = $region56
        $region55: #{tpu_custom_call.1} parent=47 // pred_region
          %s433 = sand.u32 %s33, 1
          %s434 = scalar_lea.sflag [#allocation7], %s433
          %s435 = sand.u32 %s69, 1
          %s436 = smul.addr %s435, 8
          %s437 = scalar_lea.vmem [#allocation6], %s436
          %s439 = ssub.s32 128, 128
          %440 = vsyncadd %s434, %s439
          %s441 = smul.addr %s33, 128
          %s442 = scalar_lea.hbm %s1, %s441
          %s444 = sshll.u32 %s437, 4
          %s445 = int_to_ptr.vmem [resolvable:$true] %s444
          %447 = dma.hbm_to_vmem [thread:$0]  %s442, 128, %s445, %s434
        $region56: #{tpu_custom_call.1} parent=47 // pred_fallthru
          _
        // Predicated region
        $region57: #{tpu_custom_call.1} parent=47 // pred_check
          %p448 = pneg %p105
        $region58: #{tpu_custom_call.1} parent=47 // pred_check_branch
          %450 = sbr.rel (%p448) target = $region60
        $region59: #{tpu_custom_call.1} parent=47 // pred_region
          %s451 = sand.u32 %s33, 1
          %s452 = scalar_lea.sflag [#allocation7], %s451
          %s453 = sand.u32 %s95, 1
          %s454 = smul.addr %s453, 8
          %s455 = scalar_lea.vmem [#allocation8], %s454
          %s457 = ssub.s32 128, 128
          %458 = vsyncadd %s452, %s457
          %s459 = smul.addr %s33, 128
          %s460 = scalar_lea.hbm %s2, %s459
          %s462 = sshll.u32 %s455, 4
          %s463 = int_to_ptr.vmem [resolvable:$true] %s462
          %465 = dma.hbm_to_vmem [thread:$0]  %s460, 128, %s463, %s452
        $region60: #{tpu_custom_call.1} parent=47 // pred_fallthru
          _
      $region48: #{tpu_custom_call.1} parent=5 // pred_fallthru
        _
      %p466 = scmp.le.s32.totalorder 1, %s33
      %p467 = scmp.lt.s32.totalorder %s33, 3
      %p468 = pnand %p466, %p467
      %p469 = pneg %p468
      // Predicated region
      $region61: #{tpu_custom_call.1} parent=5 // pred_check
        _
      $region62: #{tpu_custom_call.1} parent=5 // pred_check_branch
        %471 = sbr.rel (%p468) target = $region64
      $region63: #{tpu_custom_call.1} parent=5 // pred_region
        %s472 = ssub.s32 %s33, 1
        %s473 = sand.u32 %s46, 1
        %s474 = scalar_lea.sflag [#allocation4], %s473
        %s475 = sand.u32 %s46, 1
        %s476 = smul.addr %s475, 8
        %s477 = scalar_lea.vmem [#allocation3], %s476
        // Predicated region
        $region65: #{tpu_custom_call.1} parent=63 // pred_check
          %p478 = pneg %p59
        $region66: #{tpu_custom_call.1} parent=63 // pred_check_branch
          %480 = sbr.rel (%p478) target = $region68
        $region67: #{tpu_custom_call.1} parent=63 // pred_region
          %481 = dma.done %s474, 128
        $region68: #{tpu_custom_call.1} parent=63 // pred_fallthru
          _
        %s482 = sand.u32 %s38, 1
        %s483 = scalar_lea.sflag [#allocation7], %s482
        %s484 = sand.u32 %s72, 1
        %s485 = smul.addr %s484, 8
        %s486 = scalar_lea.vmem [#allocation6], %s485
        // Predicated region
        $region69: #{tpu_custom_call.1} parent=63 // pred_check
          %p487 = pneg %p85
        $region70: #{tpu_custom_call.1} parent=63 // pred_check_branch
          %489 = sbr.rel (%p487) target = $region72
        $region71: #{tpu_custom_call.1} parent=63 // pred_region
          %490 = dma.done %s483, 128
        $region72: #{tpu_custom_call.1} parent=63 // pred_fallthru
          _
        %s491 = sand.u32 %s38, 1
        %s492 = scalar_lea.sflag [#allocation7], %s491
        %s493 = sand.u32 %s98, 1
        %s494 = smul.addr %s493, 8
        %s495 = scalar_lea.vmem [#allocation8], %s494
        // Predicated region
        $region73: #{tpu_custom_call.1} parent=63 // pred_check
          %p496 = pneg %p111
        $region74: #{tpu_custom_call.1} parent=63 // pred_check_branch
          %498 = sbr.rel (%p496) target = $region76
        $region75: #{tpu_custom_call.1} parent=63 // pred_region
          %499 = dma.done %s492, 128
        $region76: #{tpu_custom_call.1} parent=63 // pred_fallthru
          _
        // Predicated region
        $region77: #{tpu_custom_call.1} parent=63 // pred_check
          %p500 = pneg %p132
        $region78: #{tpu_custom_call.1} parent=63 // pred_check_branch
          %502 = sbr.rel (%p500) target = $region80
        $region79: #{tpu_custom_call.1} parent=63 // pred_region
          %503 = dma.done [#allocation10], 512
        $region80: #{tpu_custom_call.1} parent=63 // pred_fallthru
          _
        // Predicated region
        $region81: #{tpu_custom_call.1} parent=63 // pred_check
          %p504 = pneg %p174
        $region82: #{tpu_custom_call.1} parent=63 // pred_check_branch
          %506 = sbr.rel (%p504) target = $region84
        $region83: #{tpu_custom_call.1} parent=63 // pred_region
          %507 = dma.done [#allocation10], 512
        $region84: #{tpu_custom_call.1} parent=63 // pred_fallthru
          _
        // Predicated region
        $region85: #{tpu_custom_call.1} parent=63 // pred_check
          %p508 = pneg %p216
        $region86: #{tpu_custom_call.1} parent=63 // pred_check_branch
          %510 = sbr.rel (%p508) target = $region88
        $region87: #{tpu_custom_call.1} parent=63 // pred_region
          %511 = dma.done [#allocation13], 512
        $region88: #{tpu_custom_call.1} parent=63 // pred_fallthru
          _
        // Predicated region
        $region89: #{tpu_custom_call.1} parent=63 // pred_check
          %p512 = pneg %p237
        $region90: #{tpu_custom_call.1} parent=63 // pred_check_branch
          %514 = sbr.rel (%p512) target = $region92
        $region91: #{tpu_custom_call.1} parent=63 // pred_region
          %515 = dma.done [#allocation13], 16
        $region92: #{tpu_custom_call.1} parent=63 // pred_fallthru
          _
        %s516 = sand.u32 %s46, 1
        %s517 = scalar_lea.sflag [#allocation4], %s516
        %s518 = sand.u32 %s46, 1
        %s519 = smul.addr %s518, 8
        %s520 = scalar_lea.vmem [#allocation3], %s519
        %p521 = pneg %p59
        %p522 = pneg %p56
        %s523 = sand.u32 %s38, 1
        %s524 = scalar_lea.sflag [#allocation7], %s523
        %s525 = sand.u32 %s72, 1
        %s526 = smul.addr %s525, 8
        %s527 = scalar_lea.vmem [#allocation6], %s526
        %p528 = pneg %p85
        %p529 = pneg %p82
        %s530 = sand.u32 %s38, 1
        %s531 = scalar_lea.sflag [#allocation7], %s530
        %s532 = sand.u32 %s98, 1
        %s533 = smul.addr %s532, 8
        %s534 = scalar_lea.vmem [#allocation8], %s533
        %p535 = pneg %p111
        %p536 = pneg %p108
        %p537 = pneg %p132
        %p538 = pneg %p129
        %p539 = pneg %p153
        %p540 = pneg %p150
        %p541 = pneg %p174
        %p542 = pneg %p171
        %p543 = pneg %p195
        %p544 = pneg %p192
        %p545 = pneg %p216
        %p546 = pneg %p213
        %p547 = pneg %p237
        %p548 = pneg %p234
        %p549 = pneg %p258
        %p550 = pneg %p255
        %p551 = pneg %p279
        %p552 = pneg %p276
        %p553 = pneg %p305
        %p554 = pneg %p302
        %s555 = sand.u32 %s292, 1
        %s556 = scalar_lea.sflag [#allocation5], %s555
        %s557 = sand.u32 %s292, 1
        %s558 = smul.addr %s557, 8
        %s559 = scalar_lea.vmem [#allocation15], %s558
        %p560 = pneg %p331
        %p561 = pneg %p328
        %s562 = sand.u32 %s318, 1
        %s563 = scalar_lea.sflag [#allocation17], %s562
        %s564 = sand.u32 %s318, 1
        %s565 = smul.addr %s564, 32
        %s566 = scalar_lea.vmem [#allocation16], %s565
        %v567 = vld [vmem:[%s477] sm:$0xff]
        %v568 = vld [vmem:[%s486] sm:$0xff]
        %v569 = vld [vmem:[%s495] sm:$0xff]
        %v570 = vld [vmem:[#allocation9] sm:$0xff]
        %v571 = vld [vmem:[#allocation9 + $0x8] sm:$0xff]
        %v572 = vld [vmem:[#allocation9 + $0x10] sm:$0xff]
        %v573 = vld [vmem:[#allocation9 + $0x18] sm:$0xff]
        %v574 = vld [vmem:[%s4] sm:$0x1]
        %v576 = vlaneseq
        %v577 = vshrl.u32 %v576, 7
        %v578 = vsub.s32 0, %v577
        %v579 = vrot.slane %v574, %v578
        %vm581 = vcmask 261120
        %v583 = vsel %vm581, %v567, 0
        %585 = vmatprep.subr.mxu0 0.0
        %586 = vmatpush1.msra.mxu0 %v570
        %587 = vmatprep.subr.mxu0 0.0
        %588 = vmatpush1.msra.mxu0 %v571
        %589 = vmatprep.subr.mxu0 0.0
        %590 = vmatpush1.msra.mxu0 %v572
        %591 = vmatprep.subr.mxu0 0.0
        %592 = vmatpush1.msra.mxu0 %v573
        %593 = vmatprep.subr.mxu0 0.0
        %594 = vmatpush1.msra.mxu0 0.0
        %595 = vmatprep.subr.mxu0 0.0
        %596 = vmatpush1.msra.mxu0 0.0
        %597 = vmatprep.subr.mxu0 0.0
        %598 = vmatpush1.msra.mxu0 0.0
        %599 = vmatprep.subr.mxu0 0.0
        %600 = vmatpush1.msra.mxu0 0.0
        %601 = vmatprep.subr.mxu0 0.0
        %602 = vmatpush1.msra.mxu0 0.0
        %603 = vmatprep.subr.mxu0 0.0
        %604 = vmatpush1.msra.mxu0 0.0
        %605 = vmatprep.subr.mxu0 0.0
        %606 = vmatpush1.msra.mxu0 0.0
        %607 = vmatprep.subr.mxu0 0.0
        %608 = vmatpush1.msra.mxu0 0.0
        %609 = vmatprep.subr.mxu0 0.0
        %610 = vmatpush1.msra.mxu0 0.0
        %611 = vmatprep.subr.mxu0 0.0
        %612 = vmatpush1.msra.mxu0 0.0
        %613 = vmatprep.subr.mxu0 0.0
        %614 = vmatpush1.msra.mxu0 0.0
        %615 = vmatprep.subr.mxu0 0.0
        %616 = vmatpush1.msra.mxu0 0.0
        %617 = vmatprep.subr.mxu0 0.0
        %618 = vmatpush1.msra.mxu0 0.0
        %619 = vmatprep.subr.mxu0 0.0
        %620 = vmatpush1.msra.mxu0 0.0
        %621 = vmatprep.subr.mxu0 0.0
        %622 = vmatpush1.msra.mxu0 0.0
        %623 = vmatprep.subr.mxu0 0.0
        %624 = vmatpush1.msra.mxu0 0.0
        %625 = vmatprep.subr.mxu0 0.0
        %626 = vmatpush1.msra.mxu0 0.0
        %627 = vmatprep.subr.mxu0 0.0
        %628 = vmatpush1.msra.mxu0 0.0
        %629 = vmatprep.subr.mxu0 0.0
        %630 = vmatpush1.msra.mxu0 0.0
        %631 = vmatprep.subr.mxu0 0.0
        %632 = vmatpush1.msra.mxu0 0.0
        %633 = vmatprep.subr.mxu0 0.0
        %634 = vmatpush1.msra.mxu0 0.0
        %635 = vmatprep.subr.mxu0 0.0
        %636 = vmatpush1.msra.mxu0 0.0
        %637 = vmatprep.subr.mxu0 0.0
        %638 = vmatpush1.msra.mxu0 0.0
        %639 = vmatprep.subr.mxu0 0.0
        %640 = vmatpush1.msra.mxu0 0.0
        %641 = vmatprep.subr.mxu0 0.0
        %642 = vmatpush1.msra.mxu0 0.0
        %643 = vmatprep.subr.mxu0 0.0
        %644 = vmatpush1.msra.mxu0 0.0
        %645 = vmatprep.subr.mxu0 0.0
        %646 = vmatpush1.msra.mxu0 0.0
        %647 = vmatprep.subr.mxu0 0.0
        %648 = vmatpush1.msra.mxu0 0.0
        %649 = vmatprep.mubr.f32.mxu0 0.0
        %650 = vmatmul.mubr.f32.gmra.mrb[0].mxu0 %v583
        %v651 = vpop.f32.mrb[0].mxu0
        %v652 = vadd.f32 %v579, %v651
        %v653 = vpop.f32.mrb[0].mxu0
        %654 = vdwg.mxu0
        %v655 = vmul.f32 %v652, 0.35355338
        %v656 = vld [vmem:[#allocation11] sm:$0xff]
        %v657 = vld [vmem:[#allocation11 + $0x8] sm:$0xff]
        %v658 = vld [vmem:[#allocation11 + $0x10] sm:$0xff]
        %v659 = vld [vmem:[#allocation11 + $0x18] sm:$0xff]
        %v660 = vld [vmem:[%s6] sm:$0x1]
        %v662 = vlaneseq
        %v663 = vshrl.u32 %v662, 7
        %v664 = vsub.s32 0, %v663
        %v665 = vrot.slane %v660, %v664
        %v668 = vsel %vm581, %v568, 0
        %670 = vmatprep.subr.mxu0 0.0
        %671 = vmatpush1.msra.mxu0 %v656
        %672 = vmatprep.subr.mxu0 0.0
        %673 = vmatpush1.msra.mxu0 %v657
        %674 = vmatprep.subr.mxu0 0.0
        %675 = vmatpush1.msra.mxu0 %v658
        %676 = vmatprep.subr.mxu0 0.0
        %677 = vmatpush1.msra.mxu0 %v659
        %678 = vmatprep.subr.mxu0 0.0
        %679 = vmatpush1.msra.mxu0 0.0
        %680 = vmatprep.subr.mxu0 0.0
        %681 = vmatpush1.msra.mxu0 0.0
        %682 = vmatprep.subr.mxu0 0.0
        %683 = vmatpush1.msra.mxu0 0.0
        %684 = vmatprep.subr.mxu0 0.0
        %685 = vmatpush1.msra.mxu0 0.0
        %686 = vmatprep.subr.mxu0 0.0
        %687 = vmatpush1.msra.mxu0 0.0
        %688 = vmatprep.subr.mxu0 0.0
        %689 = vmatpush1.msra.mxu0 0.0
        %690 = vmatprep.subr.mxu0 0.0
        %691 = vmatpush1.msra.mxu0 0.0
        %692 = vmatprep.subr.mxu0 0.0
        %693 = vmatpush1.msra.mxu0 0.0
        %694 = vmatprep.subr.mxu0 0.0
        %695 = vmatpush1.msra.mxu0 0.0
        %696 = vmatprep.subr.mxu0 0.0
        %697 = vmatpush1.msra.mxu0 0.0
        %698 = vmatprep.subr.mxu0 0.0
        %699 = vmatpush1.msra.mxu0 0.0
        %700 = vmatprep.subr.mxu0 0.0
        %701 = vmatpush1.msra.mxu0 0.0
        %702 = vmatprep.subr.mxu0 0.0
        %703 = vmatpush1.msra.mxu0 0.0
        %704 = vmatprep.subr.mxu0 0.0
        %705 = vmatpush1.msra.mxu0 0.0
        %706 = vmatprep.subr.mxu0 0.0
        %707 = vmatpush1.msra.mxu0 0.0
        %708 = vmatprep.subr.mxu0 0.0
        %709 = vmatpush1.msra.mxu0 0.0
        %710 = vmatprep.subr.mxu0 0.0
        %711 = vmatpush1.msra.mxu0 0.0
        %712 = vmatprep.subr.mxu0 0.0
        %713 = vmatpush1.msra.mxu0 0.0
        %714 = vmatprep.subr.mxu0 0.0
        %715 = vmatpush1.msra.mxu0 0.0
        %716 = vmatprep.subr.mxu0 0.0
        %717 = vmatpush1.msra.mxu0 0.0
        %718 = vmatprep.subr.mxu0 0.0
        %719 = vmatpush1.msra.mxu0 0.0
        %720 = vmatprep.subr.mxu0 0.0
        %721 = vmatpush1.msra.mxu0 0.0
        %722 = vmatprep.subr.mxu0 0.0
        %723 = vmatpush1.msra.mxu0 0.0
        %724 = vmatprep.subr.mxu0 0.0
        %725 = vmatpush1.msra.mxu0 0.0
        %726 = vmatprep.subr.mxu0 0.0
        %727 = vmatpush1.msra.mxu0 0.0
        %728 = vmatprep.subr.mxu0 0.0
        %729 = vmatpush1.msra.mxu0 0.0
        %730 = vmatprep.subr.mxu0 0.0
        %731 = vmatpush1.msra.mxu0 0.0
        %732 = vmatprep.subr.mxu0 0.0
        %733 = vmatpush1.msra.mxu0 0.0
        %734 = vmatprep.mubr.f32.mxu0 0.0
        %735 = vmatmul.mubr.f32.gmra.mrb[0].mxu0 %v668
        %v736 = vpop.f32.mrb[0].mxu0
        %v737 = vadd.f32 %v665, %v736
        %v738 = vpop.f32.mrb[0].mxu0
        %739 = vdwg.mxu0
        %v740 = vld [vmem:[#allocation12] sm:$0xff]
        %v741 = vld [vmem:[#allocation12 + $0x8] sm:$0xff]
        %v742 = vld [vmem:[#allocation12 + $0x10] sm:$0xff]
        %v743 = vld [vmem:[#allocation12 + $0x18] sm:$0xff]
        %v744 = vld [vmem:[#allocation14] sm:$0x1]
        %v746 = vlaneseq
        %v747 = vshrl.u32 %v746, 7
        %v748 = vsub.s32 0, %v747
        %v749 = vrot.slane %v744, %v748
        %v752 = vsel %vm581, %v569, 0
        %754 = vmatprep.subr.mxu0 0.0
        %755 = vmatpush1.msra.mxu0 %v740
        %756 = vmatprep.subr.mxu0 0.0
        %757 = vmatpush1.msra.mxu0 %v741
        %758 = vmatprep.subr.mxu0 0.0
        %759 = vmatpush1.msra.mxu0 %v742
        %760 = vmatprep.subr.mxu0 0.0
        %761 = vmatpush1.msra.mxu0 %v743
        %762 = vmatprep.subr.mxu0 0.0
        %763 = vmatpush1.msra.mxu0 0.0
        %764 = vmatprep.subr.mxu0 0.0
        %765 = vmatpush1.msra.mxu0 0.0
        %766 = vmatprep.subr.mxu0 0.0
        %767 = vmatpush1.msra.mxu0 0.0
        %768 = vmatprep.subr.mxu0 0.0
        %769 = vmatpush1.msra.mxu0 0.0
        %770 = vmatprep.subr.mxu0 0.0
        %771 = vmatpush1.msra.mxu0 0.0
        %772 = vmatprep.subr.mxu0 0.0
        %773 = vmatpush1.msra.mxu0 0.0
        %774 = vmatprep.subr.mxu0 0.0
        %775 = vmatpush1.msra.mxu0 0.0
        %776 = vmatprep.subr.mxu0 0.0
        %777 = vmatpush1.msra.mxu0 0.0
        %778 = vmatprep.subr.mxu0 0.0
        %779 = vmatpush1.msra.mxu0 0.0
        %780 = vmatprep.subr.mxu0 0.0
        %781 = vmatpush1.msra.mxu0 0.0
        %782 = vmatprep.subr.mxu0 0.0
        %783 = vmatpush1.msra.mxu0 0.0
        %784 = vmatprep.subr.mxu0 0.0
        %785 = vmatpush1.msra.mxu0 0.0
        %786 = vmatprep.subr.mxu0 0.0
        %787 = vmatpush1.msra.mxu0 0.0
        %788 = vmatprep.subr.mxu0 0.0
        %789 = vmatpush1.msra.mxu0 0.0
        %790 = vmatprep.subr.mxu0 0.0
        %791 = vmatpush1.msra.mxu0 0.0
        %792 = vmatprep.subr.mxu0 0.0
        %793 = vmatpush1.msra.mxu0 0.0
        %794 = vmatprep.subr.mxu0 0.0
        %795 = vmatpush1.msra.mxu0 0.0
        %796 = vmatprep.subr.mxu0 0.0
        %797 = vmatpush1.msra.mxu0 0.0
        %798 = vmatprep.subr.mxu0 0.0
        %799 = vmatpush1.msra.mxu0 0.0
        %800 = vmatprep.subr.mxu0 0.0
        %801 = vmatpush1.msra.mxu0 0.0
        %802 = vmatprep.subr.mxu0 0.0
        %803 = vmatpush1.msra.mxu0 0.0
        %804 = vmatprep.subr.mxu0 0.0
        %805 = vmatpush1.msra.mxu0 0.0
        %806 = vmatprep.subr.mxu0 0.0
        %807 = vmatpush1.msra.mxu0 0.0
        %808 = vmatprep.subr.mxu0 0.0
        %809 = vmatpush1.msra.mxu0 0.0
        %810 = vmatprep.subr.mxu0 0.0
        %811 = vmatpush1.msra.mxu0 0.0
        %812 = vmatprep.subr.mxu0 0.0
        %813 = vmatpush1.msra.mxu0 0.0
        %814 = vmatprep.subr.mxu0 0.0
        %815 = vmatpush1.msra.mxu0 0.0
        %816 = vmatprep.subr.mxu0 0.0
        %817 = vmatpush1.msra.mxu0 0.0
        %818 = vmatprep.mubr.f32.mxu0 0.0
        %819 = vmatmul.mubr.f32.gmra.mrb[0].mxu0 %v752
        %v820 = vpop.f32.mrb[0].mxu0
        %v821 = vadd.f32 %v749, %v820
        %v822 = vpop.f32.mrb[0].mxu0
        %823 = vdwg.mxu0
        %vm824 = vcmask 64512
        %v826 = vsel %vm824, %v655, 0
        %v829 = vsel %vm824, %v737, 0
        %831 = vmatprep.subr.mxu0 0.0
        %832 = vmatpush1.xpose.msra.mxu0 %v829
        %833 = vmatprep.subr.mxu0 0.0
        %834 = vmatpush1.xpose.msra.mxu0 0.0
        %835 = vmatprep.subr.mxu0 0.0
        %836 = vmatpush1.xpose.msra.mxu0 0.0
        %837 = vmatprep.subr.mxu0 0.0
        %838 = vmatpush1.xpose.msra.mxu0 0.0
        %839 = vmatprep.subr.mxu0 0.0
        %840 = vmatpush1.xpose.msra.mxu0 0.0
        %841 = vmatprep.subr.mxu0 0.0
        %842 = vmatpush1.xpose.msra.mxu0 0.0
        %843 = vmatprep.subr.mxu0 0.0
        %844 = vmatpush1.xpose.msra.mxu0 0.0
        %845 = vmatprep.subr.mxu0 0.0
        %846 = vmatpush1.xpose.msra.mxu0 0.0
        %847 = vmatprep.subr.mxu0 0.0
        %848 = vmatpush1.xpose.msra.mxu0 0.0
        %849 = vmatprep.subr.mxu0 0.0
        %850 = vmatpush1.xpose.msra.mxu0 0.0
        %851 = vmatprep.subr.mxu0 0.0
        %852 = vmatpush1.xpose.msra.mxu0 0.0
        %853 = vmatprep.subr.mxu0 0.0
        %854 = vmatpush1.xpose.msra.mxu0 0.0
        %855 = vmatprep.subr.mxu0 0.0
        %856 = vmatpush1.xpose.msra.mxu0 0.0
        %857 = vmatprep.subr.mxu0 0.0
        %858 = vmatpush1.xpose.msra.mxu0 0.0
        %859 = vmatprep.subr.mxu0 0.0
        %860 = vmatpush1.xpose.msra.mxu0 0.0
        %861 = vmatprep.subr.mxu0 0.0
        %862 = vmatpush1.xpose.msra.mxu0 0.0
        %863 = vmatprep.subr.mxu0 0.0
        %864 = vmatpush1.xpose.msra.mxu0 0.0
        %865 = vmatprep.subr.mxu0 0.0
        %866 = vmatpush1.xpose.msra.mxu0 0.0
        %867 = vmatprep.subr.mxu0 0.0
        %868 = vmatpush1.xpose.msra.mxu0 0.0
        %869 = vmatprep.subr.mxu0 0.0
        %870 = vmatpush1.xpose.msra.mxu0 0.0
        %871 = vmatprep.subr.mxu0 0.0
        %872 = vmatpush1.xpose.msra.mxu0 0.0
        %873 = vmatprep.subr.mxu0 0.0
        %874 = vmatpush1.xpose.msra.mxu0 0.0
        %875 = vmatprep.subr.mxu0 0.0
        %876 = vmatpush1.xpose.msra.mxu0 0.0
        %877 = vmatprep.subr.mxu0 0.0
        %878 = vmatpush1.xpose.msra.mxu0 0.0
        %879 = vmatprep.subr.mxu0 0.0
        %880 = vmatpush1.xpose.msra.mxu0 0.0
        %881 = vmatprep.subr.mxu0 0.0
        %882 = vmatpush1.xpose.msra.mxu0 0.0
        %883 = vmatprep.subr.mxu0 0.0
        %884 = vmatpush1.xpose.msra.mxu0 0.0
        %885 = vmatprep.subr.mxu0 0.0
        %886 = vmatpush1.xpose.msra.mxu0 0.0
        %887 = vmatprep.subr.mxu0 0.0
        %888 = vmatpush1.xpose.msra.mxu0 0.0
        %889 = vmatprep.subr.mxu0 0.0
        %890 = vmatpush1.xpose.msra.mxu0 0.0
        %891 = vmatprep.subr.mxu0 0.0
        %892 = vmatpush1.xpose.msra.mxu0 0.0
        %893 = vmatprep.subr.mxu0 0.0
        %894 = vmatpush1.xpose.msra.mxu0 0.0
        %895 = vmatprep.mubr.f32.mxu0 0.0
        %896 = vmatmul.mubr.f32.gmra.mrb[0].mxu0 %v826
        %v897 = vpop.f32.mrb[0].mxu0
        %v898 = vadd.f32 0.0, %v897
        %v899 = vpop.f32.mrb[0].mxu0
        %900 = vdwg.mxu0
        %v901 = vsel %vm824, %v898, -inf
        %902 = vmax.xlane.f32.xlu0 %v901
        %v903 = vpop.xlane.xlu0 %902
        %v904 = vsub.f32 %v898, %v903
        %v905 = vmul.f32 %v904, 1.442695
        %v906 = vpow.pop %v905
        %v907 = vsel %vm824, %v906, 0.0
        %908 = vadd.xlane.f32.xlu0 %v907
        %v909 = vpop.xlane.xlu0 %908
        %v910 = vrcp.pop %v909
        %v911 = vmul.f32 %v909, %v910
        %v912 = vsub.f32 2.0, %v911
        %v913 = vmul.f32 %v910, %v912
        %v914 = vmul.f32 %v906, %v913
        %915 = vst.msk [vmem:[%s566] sm:$0xff] %vm824, %v914
        %v917 = vsel %vm824, %v914, 0
        %919 = vmatprep.subr.mxu0 0.0
        %920 = vmatpush1.msra.mxu0 %v821
        %921 = vmatprep.subr.mxu0 0.0
        %922 = vmatpush1.msra.mxu0 0.0
        %923 = vmatprep.subr.mxu0 0.0
        %924 = vmatpush1.msra.mxu0 0.0
        %925 = vmatprep.subr.mxu0 0.0
        %926 = vmatpush1.msra.mxu0 0.0
        %927 = vmatprep.subr.mxu0 0.0
        %928 = vmatpush1.msra.mxu0 0.0
        %929 = vmatprep.subr.mxu0 0.0
        %930 = vmatpush1.msra.mxu0 0.0
        %931 = vmatprep.subr.mxu0 0.0
        %932 = vmatpush1.msra.mxu0 0.0
        %933 = vmatprep.subr.mxu0 0.0
        %934 = vmatpush1.msra.mxu0 0.0
        %935 = vmatprep.subr.mxu0 0.0
        %936 = vmatpush1.msra.mxu0 0.0
        %937 = vmatprep.subr.mxu0 0.0
        %938 = vmatpush1.msra.mxu0 0.0
        %939 = vmatprep.subr.mxu0 0.0
        %940 = vmatpush1.msra.mxu0 0.0
        %941 = vmatprep.subr.mxu0 0.0
        %942 = vmatpush1.msra.mxu0 0.0
        %943 = vmatprep.subr.mxu0 0.0
        %944 = vmatpush1.msra.mxu0 0.0
        %945 = vmatprep.subr.mxu0 0.0
        %946 = vmatpush1.msra.mxu0 0.0
        %947 = vmatprep.subr.mxu0 0.0
        %948 = vmatpush1.msra.mxu0 0.0
        %949 = vmatprep.subr.mxu0 0.0
        %950 = vmatpush1.msra.mxu0 0.0
        %951 = vmatprep.subr.mxu0 0.0
        %952 = vmatpush1.msra.mxu0 0.0
        %953 = vmatprep.subr.mxu0 0.0
        %954 = vmatpush1.msra.mxu0 0.0
        %955 = vmatprep.subr.mxu0 0.0
        %956 = vmatpush1.msra.mxu0 0.0
        %957 = vmatprep.subr.mxu0 0.0
        %958 = vmatpush1.msra.mxu0 0.0
        %959 = vmatprep.subr.mxu0 0.0
        %960 = vmatpush1.msra.mxu0 0.0
        %961 = vmatprep.subr.mxu0 0.0
        %962 = vmatpush1.msra.mxu0 0.0
        %963 = vmatprep.subr.mxu0 0.0
        %964 = vmatpush1.msra.mxu0 0.0
        %965 = vmatprep.subr.mxu0 0.0
        %966 = vmatpush1.msra.mxu0 0.0
        %967 = vmatprep.subr.mxu0 0.0
        %968 = vmatpush1.msra.mxu0 0.0
        %969 = vmatprep.subr.mxu0 0.0
        %970 = vmatpush1.msra.mxu0 0.0
        %971 = vmatprep.subr.mxu0 0.0
        %972 = vmatpush1.msra.mxu0 0.0
        %973 = vmatprep.subr.mxu0 0.0
        %974 = vmatpush1.msra.mxu0 0.0
        %975 = vmatprep.subr.mxu0 0.0
        %976 = vmatpush1.msra.mxu0 0.0
        %977 = vmatprep.subr.mxu0 0.0
        %978 = vmatpush1.msra.mxu0 0.0
        %979 = vmatprep.subr.mxu0 0.0
        %980 = vmatpush1.msra.mxu0 0.0
        %981 = vmatprep.subr.mxu0 0.0
        %982 = vmatpush1.msra.mxu0 0.0
        %983 = vmatprep.mubr.f32.mxu0 0.0
        %984 = vmatmul.mubr.f32.gmra.mrb[0].mxu0 %v917
        %v985 = vpop.f32.mrb[0].mxu0
        %v986 = vadd.f32 0.0, %v985
        %v987 = vpop.f32.mrb[0].mxu0
        %988 = vdwg.mxu0
        %989 = vst.msk [vmem:[#allocation2] sm:$0xff] %vm824, %v986
        %990 = vrot.lane.b32.xlu0 %v655, 120
        %v991 = vpop.permute.xlu0 %990
        %992 = vrot.lane.b32.xlu0 %v737, 120
        %v993 = vpop.permute.xlu0 %992
        %v994 = vsel %vm824, %v991, 0
        %v996 = vsel %vm824, %v993, 0
        %998 = vmatprep.subr.mxu0 0.0
        %999 = vmatpush1.xpose.msra.mxu0 %v996
        %1000 = vmatprep.subr.mxu0 0.0
        %1001 = vmatpush1.xpose.msra.mxu0 0.0
        %1002 = vmatprep.subr.mxu0 0.0
        %1003 = vmatpush1.xpose.msra.mxu0 0.0
        %1004 = vmatprep.subr.mxu0 0.0
        %1005 = vmatpush1.xpose.msra.mxu0 0.0
        %1006 = vmatprep.subr.mxu0 0.0
        %1007 = vmatpush1.xpose.msra.mxu0 0.0
        %1008 = vmatprep.subr.mxu0 0.0
        %1009 = vmatpush1.xpose.msra.mxu0 0.0
        %1010 = vmatprep.subr.mxu0 0.0
        %1011 = vmatpush1.xpose.msra.mxu0 0.0
        %1012 = vmatprep.subr.mxu0 0.0
        %1013 = vmatpush1.xpose.msra.mxu0 0.0
        %1014 = vmatprep.subr.mxu0 0.0
        %1015 = vmatpush1.xpose.msra.mxu0 0.0
        %1016 = vmatprep.subr.mxu0 0.0
        %1017 = vmatpush1.xpose.msra.mxu0 0.0
        %1018 = vmatprep.subr.mxu0 0.0
        %1019 = vmatpush1.xpose.msra.mxu0 0.0
        %1020 = vmatprep.subr.mxu0 0.0
        %1021 = vmatpush1.xpose.msra.mxu0 0.0
        %1022 = vmatprep.subr.mxu0 0.0
        %1023 = vmatpush1.xpose.msra.mxu0 0.0
        %1024 = vmatprep.subr.mxu0 0.0
        %1025 = vmatpush1.xpose.msra.mxu0 0.0
        %1026 = vmatprep.subr.mxu0 0.0
        %1027 = vmatpush1.xpose.msra.mxu0 0.0
        %1028 = vmatprep.subr.mxu0 0.0
        %1029 = vmatpush1.xpose.msra.mxu0 0.0
        %1030 = vmatprep.subr.mxu0 0.0
        %1031 = vmatpush1.xpose.msra.mxu0 0.0
        %1032 = vmatprep.subr.mxu0 0.0
        %1033 = vmatpush1.xpose.msra.mxu0 0.0
        %1034 = vmatprep.subr.mxu0 0.0
        %1035 = vmatpush1.xpose.msra.mxu0 0.0
        %1036 = vmatprep.subr.mxu0 0.0
        %1037 = vmatpush1.xpose.msra.mxu0 0.0
        %1038 = vmatprep.subr.mxu0 0.0
        %1039 = vmatpush1.xpose.msra.mxu0 0.0
        %1040 = vmatprep.subr.mxu0 0.0
        %1041 = vmatpush1.xpose.msra.mxu0 0.0
        %1042 = vmatprep.subr.mxu0 0.0
        %1043 = vmatpush1.xpose.msra.mxu0 0.0
        %1044 = vmatprep.subr.mxu0 0.0
        %1045 = vmatpush1.xpose.msra.mxu0 0.0
        %1046 = vmatprep.subr.mxu0 0.0
        %1047 = vmatpush1.xpose.msra.mxu0 0.0
        %1048 = vmatprep.subr.mxu0 0.0
        %1049 = vmatpush1.xpose.msra.mxu0 0.0
        %1050 = vmatprep.subr.mxu0 0.0
        %1051 = vmatpush1.xpose.msra.mxu0 0.0
        %1052 = vmatprep.subr.mxu0 0.0
        %1053 = vmatpush1.xpose.msra.mxu0 0.0
        %1054 = vmatprep.subr.mxu0 0.0
        %1055 = vmatpush1.xpose.msra.mxu0 0.0
        %1056 = vmatprep.subr.mxu0 0.0
        %1057 = vmatpush1.xpose.msra.mxu0 0.0
        %1058 = vmatprep.subr.mxu0 0.0
        %1059 = vmatpush1.xpose.msra.mxu0 0.0
        %1060 = vmatprep.subr.mxu0 0.0
        %1061 = vmatpush1.xpose.msra.mxu0 0.0
        %1062 = vmatprep.mubr.f32.mxu0 0.0
        %1063 = vmatmul.mubr.f32.gmra.mrb[0].mxu0 %v994
        %v1064 = vpop.f32.mrb[0].mxu0
        %v1065 = vadd.f32 0.0, %v1064
        %v1066 = vpop.f32.mrb[0].mxu0
        %1067 = vdwg.mxu0
        %v1068 = vsel %vm824, %v1065, -inf
        %1069 = vmax.xlane.f32.xlu0 %v1068
        %v1070 = vpop.xlane.xlu0 %1069
        %v1071 = vsub.f32 %v1065, %v1070
        %v1072 = vmul.f32 %v1071, 1.442695
        %v1073 = vpow.pop %v1072
        %v1074 = vsel %vm824, %v1073, 0.0
        %1075 = vadd.xlane.f32.xlu0 %v1074
        %v1076 = vpop.xlane.xlu0 %1075
        %v1077 = vrcp.pop %v1076
        %v1078 = vmul.f32 %v1076, %v1077
        %v1079 = vsub.f32 2.0, %v1078
        %v1080 = vmul.f32 %v1077, %v1079
        %v1081 = vmul.f32 %v1073, %v1080
        %s1082 = scalar_lea.vmem %s566, 8 [#allocation16]
        %1083 = vst.msk [vmem:[%s1082] sm:$0xff] %vm824, %v1081
        %1085 = vrot.lane.b32.xlu0 %v821, 120
        %v1086 = vpop.permute.xlu0 %1085
        %v1089 = vsel %vm824, %v1081, 0
        %1091 = vmatprep.subr.mxu0 0.0
        %1092 = vmatpush1.msra.mxu0 %v1086
        %1093 = vmatprep.subr.mxu0 0.0
        %1094 = vmatpush1.msra.mxu0 0.0
        %1095 = vmatprep.subr.mxu0 0.0
        %1096 = vmatpush1.msra.mxu0 0.0
        %1097 = vmatprep.subr.mxu0 0.0
        %1098 = vmatpush1.msra.mxu0 0.0
        %1099 = vmatprep.subr.mxu0 0.0
        %1100 = vmatpush1.msra.mxu0 0.0
        %1101 = vmatprep.subr.mxu0 0.0
        %1102 = vmatpush1.msra.mxu0 0.0
        %1103 = vmatprep.subr.mxu0 0.0
        %1104 = vmatpush1.msra.mxu0 0.0
        %1105 = vmatprep.subr.mxu0 0.0
        %1106 = vmatpush1.msra.mxu0 0.0
        %1107 = vmatprep.subr.mxu0 0.0
        %1108 = vmatpush1.msra.mxu0 0.0
        %1109 = vmatprep.subr.mxu0 0.0
        %1110 = vmatpush1.msra.mxu0 0.0
        %1111 = vmatprep.subr.mxu0 0.0
        %1112 = vmatpush1.msra.mxu0 0.0
        %1113 = vmatprep.subr.mxu0 0.0
        %1114 = vmatpush1.msra.mxu0 0.0
        %1115 = vmatprep.subr.mxu0 0.0
        %1116 = vmatpush1.msra.mxu0 0.0
        %1117 = vmatprep.subr.mxu0 0.0
        %1118 = vmatpush1.msra.mxu0 0.0
        %1119 = vmatprep.subr.mxu0 0.0
        %1120 = vmatpush1.msra.mxu0 0.0
        %1121 = vmatprep.subr.mxu0 0.0
        %1122 = vmatpush1.msra.mxu0 0.0
        %1123 = vmatprep.subr.mxu0 0.0
        %1124 = vmatpush1.msra.mxu0 0.0
        %1125 = vmatprep.subr.mxu0 0.0
        %1126 = vmatpush1.msra.mxu0 0.0
        %1127 = vmatprep.subr.mxu0 0.0
        %1128 = vmatpush1.msra.mxu0 0.0
        %1129 = vmatprep.subr.mxu0 0.0
        %1130 = vmatpush1.msra.mxu0 0.0
        %1131 = vmatprep.subr.mxu0 0.0
        %1132 = vmatpush1.msra.mxu0 0.0
        %1133 = vmatprep.subr.mxu0 0.0
        %1134 = vmatpush1.msra.mxu0 0.0
        %1135 = vmatprep.subr.mxu0 0.0
        %1136 = vmatpush1.msra.mxu0 0.0
        %1137 = vmatprep.subr.mxu0 0.0
        %1138 = vmatpush1.msra.mxu0 0.0
        %1139 = vmatprep.subr.mxu0 0.0
        %1140 = vmatpush1.msra.mxu0 0.0
        %1141 = vmatprep.subr.mxu0 0.0
        %1142 = vmatpush1.msra.mxu0 0.0
        %1143 = vmatprep.subr.mxu0 0.0
        %1144 = vmatpush1.msra.mxu0 0.0
        %1145 = vmatprep.subr.mxu0 0.0
        %1146 = vmatpush1.msra.mxu0 0.0
        %1147 = vmatprep.subr.mxu0 0.0
        %1148 = vmatpush1.msra.mxu0 0.0
        %1149 = vmatprep.subr.mxu0 0.0
        %1150 = vmatpush1.msra.mxu0 0.0
        %1151 = vmatprep.subr.mxu0 0.0
        %1152 = vmatpush1.msra.mxu0 0.0
        %1153 = vmatprep.subr.mxu0 0.0
        %1154 = vmatpush1.msra.mxu0 0.0
        %1155 = vmatprep.mubr.f32.mxu0 0.0
        %1156 = vmatmul.mubr.f32.gmra.mrb[0].mxu0 %v1089
        %v1157 = vpop.f32.mrb[0].mxu0
        %v1158 = vadd.f32 0.0, %v1157
        %v1159 = vpop.f32.mrb[0].mxu0
        %1160 = vdwg.mxu0
        %1162 = vrot.lane.b32.xlu0 %v1158, 8
        %v1163 = vpop.permute.xlu0 %1162
        %vm1165 = vcmask 130112
        %1166 = vst.msk [vmem:[#allocation2] sm:$0xff] %vm1165, %v1163
        %1167 = vrot.lane.b32.xlu0 %v655, 112
        %v1168 = vpop.permute.xlu0 %1167
        %1169 = vrot.lane.b32.xlu0 %v737, 112
        %v1170 = vpop.permute.xlu0 %1169
        %v1171 = vsel %vm824, %v1168, 0
        %v1173 = vsel %vm824, %v1170, 0
        %1175 = vmatprep.subr.mxu0 0.0
        %1176 = vmatpush1.xpose.msra.mxu0 %v1173
        %1177 = vmatprep.subr.mxu0 0.0
        %1178 = vmatpush1.xpose.msra.mxu0 0.0
        %1179 = vmatprep.subr.mxu0 0.0
        %1180 = vmatpush1.xpose.msra.mxu0 0.0
        %1181 = vmatprep.subr.mxu0 0.0
        %1182 = vmatpush1.xpose.msra.mxu0 0.0
        %1183 = vmatprep.subr.mxu0 0.0
        %1184 = vmatpush1.xpose.msra.mxu0 0.0
        %1185 = vmatprep.subr.mxu0 0.0
        %1186 = vmatpush1.xpose.msra.mxu0 0.0
        %1187 = vmatprep.subr.mxu0 0.0
        %1188 = vmatpush1.xpose.msra.mxu0 0.0
        %1189 = vmatprep.subr.mxu0 0.0
        %1190 = vmatpush1.xpose.msra.mxu0 0.0
        %1191 = vmatprep.subr.mxu0 0.0
        %1192 = vmatpush1.xpose.msra.mxu0 0.0
        %1193 = vmatprep.subr.mxu0 0.0
        %1194 = vmatpush1.xpose.msra.mxu0 0.0
        %1195 = vmatprep.subr.mxu0 0.0
        %1196 = vmatpush1.xpose.msra.mxu0 0.0
        %1197 = vmatprep.subr.mxu0 0.0
        %1198 = vmatpush1.xpose.msra.mxu0 0.0
        %1199 = vmatprep.subr.mxu0 0.0
        %1200 = vmatpush1.xpose.msra.mxu0 0.0
        %1201 = vmatprep.subr.mxu0 0.0
        %1202 = vmatpush1.xpose.msra.mxu0 0.0
        %1203 = vmatprep.subr.mxu0 0.0
        %1204 = vmatpush1.xpose.msra.mxu0 0.0
        %1205 = vmatprep.subr.mxu0 0.0
        %1206 = vmatpush1.xpose.msra.mxu0 0.0
        %1207 = vmatprep.subr.mxu0 0.0
        %1208 = vmatpush1.xpose.msra.mxu0 0.0
        %1209 = vmatprep.subr.mxu0 0.0
        %1210 = vmatpush1.xpose.msra.mxu0 0.0
        %1211 = vmatprep.subr.mxu0 0.0
        %1212 = vmatpush1.xpose.msra.mxu0 0.0
        %1213 = vmatprep.subr.mxu0 0.0
        %1214 = vmatpush1.xpose.msra.mxu0 0.0
        %1215 = vmatprep.subr.mxu0 0.0
        %1216 = vmatpush1.xpose.msra.mxu0 0.0
        %1217 = vmatprep.subr.mxu0 0.0
        %1218 = vmatpush1.xpose.msra.mxu0 0.0
        %1219 = vmatprep.subr.mxu0 0.0
        %1220 = vmatpush1.xpose.msra.mxu0 0.0
        %1221 = vmatprep.subr.mxu0 0.0
        %1222 = vmatpush1.xpose.msra.mxu0 0.0
        %1223 = vmatprep.subr.mxu0 0.0
        %1224 = vmatpush1.xpose.msra.mxu0 0.0
        %1225 = vmatprep.subr.mxu0 0.0
        %1226 = vmatpush1.xpose.msra.mxu0 0.0
        %1227 = vmatprep.subr.mxu0 0.0
        %1228 = vmatpush1.xpose.msra.mxu0 0.0
        %1229 = vmatprep.subr.mxu0 0.0
        %1230 = vmatpush1.xpose.msra.mxu0 0.0
        %1231 = vmatprep.subr.mxu0 0.0
        %1232 = vmatpush1.xpose.msra.mxu0 0.0
        %1233 = vmatprep.subr.mxu0 0.0
        %1234 = vmatpush1.xpose.msra.mxu0 0.0
        %1235 = vmatprep.subr.mxu0 0.0
        %1236 = vmatpush1.xpose.msra.mxu0 0.0
        %1237 = vmatprep.subr.mxu0 0.0
        %1238 = vmatpush1.xpose.msra.mxu0 0.0
        %1239 = vmatprep.mubr.f32.mxu0 0.0
        %1240 = vmatmul.mubr.f32.gmra.mrb[0].mxu0 %v1171
        %v1241 = vpop.f32.mrb[0].mxu0
        %v1242 = vadd.f32 0.0, %v1241
        %v1243 = vpop.f32.mrb[0].mxu0
        %1244 = vdwg.mxu0
        %v1245 = vsel %vm824, %v1242, -inf
        %1246 = vmax.xlane.f32.xlu0 %v1245
        %v1247 = vpop.xlane.xlu0 %1246
        %v1248 = vsub.f32 %v1242, %v1247
        %v1249 = vmul.f32 %v1248, 1.442695
        %v1250 = vpow.pop %v1249
        %v1251 = vsel %vm824, %v1250, 0.0
        %1252 = vadd.xlane.f32.xlu0 %v1251
        %v1253 = vpop.xlane.xlu0 %1252
        %v1254 = vrcp.pop %v1253
        %v1255 = vmul.f32 %v1253, %v1254
        %v1256 = vsub.f32 2.0, %v1255
        %v1257 = vmul.f32 %v1254, %v1256
        %v1258 = vmul.f32 %v1250, %v1257
        %s1259 = scalar_lea.vmem %s566, 16 [#allocation16]
        %1260 = vst.msk [vmem:[%s1259] sm:$0xff] %vm824, %v1258
        %1261 = vrot.lane.b32.xlu0 %v821, 112
        %v1262 = vpop.permute.xlu0 %1261
        %v1265 = vsel %vm824, %v1258, 0
        %1267 = vmatprep.subr.mxu0 0.0
        %1268 = vmatpush1.msra.mxu0 %v1262
        %1269 = vmatprep.subr.mxu0 0.0
        %1270 = vmatpush1.msra.mxu0 0.0
        %1271 = vmatprep.subr.mxu0 0.0
        %1272 = vmatpush1.msra.mxu0 0.0
        %1273 = vmatprep.subr.mxu0 0.0
        %1274 = vmatpush1.msra.mxu0 0.0
        %1275 = vmatprep.subr.mxu0 0.0
        %1276 = vmatpush1.msra.mxu0 0.0
        %1277 = vmatprep.subr.mxu0 0.0
        %1278 = vmatpush1.msra.mxu0 0.0
        %1279 = vmatprep.subr.mxu0 0.0
        %1280 = vmatpush1.msra.mxu0 0.0
        %1281 = vmatprep.subr.mxu0 0.0
        %1282 = vmatpush1.msra.mxu0 0.0
        %1283 = vmatprep.subr.mxu0 0.0
        %1284 = vmatpush1.msra.mxu0 0.0
        %1285 = vmatprep.subr.mxu0 0.0
        %1286 = vmatpush1.msra.mxu0 0.0
        %1287 = vmatprep.subr.mxu0 0.0
        %1288 = vmatpush1.msra.mxu0 0.0
        %1289 = vmatprep.subr.mxu0 0.0
        %1290 = vmatpush1.msra.mxu0 0.0
        %1291 = vmatprep.subr.mxu0 0.0
        %1292 = vmatpush1.msra.mxu0 0.0
        %1293 = vmatprep.subr.mxu0 0.0
        %1294 = vmatpush1.msra.mxu0 0.0
        %1295 = vmatprep.subr.mxu0 0.0
        %1296 = vmatpush1.msra.mxu0 0.0
        %1297 = vmatprep.subr.mxu0 0.0
        %1298 = vmatpush1.msra.mxu0 0.0
        %1299 = vmatprep.subr.mxu0 0.0
        %1300 = vmatpush1.msra.mxu0 0.0
        %1301 = vmatprep.subr.mxu0 0.0
        %1302 = vmatpush1.msra.mxu0 0.0
        %1303 = vmatprep.subr.mxu0 0.0
        %1304 = vmatpush1.msra.mxu0 0.0
        %1305 = vmatprep.subr.mxu0 0.0
        %1306 = vmatpush1.msra.mxu0 0.0
        %1307 = vmatprep.subr.mxu0 0.0
        %1308 = vmatpush1.msra.mxu0 0.0
        %1309 = vmatprep.subr.mxu0 0.0
        %1310 = vmatpush1.msra.mxu0 0.0
        %1311 = vmatprep.subr.mxu0 0.0
        %1312 = vmatpush1.msra.mxu0 0.0
        %1313 = vmatprep.subr.mxu0 0.0
        %1314 = vmatpush1.msra.mxu0 0.0
        %1315 = vmatprep.subr.mxu0 0.0
        %1316 = vmatpush1.msra.mxu0 0.0
        %1317 = vmatprep.subr.mxu0 0.0
        %1318 = vmatpush1.msra.mxu0 0.0
        %1319 = vmatprep.subr.mxu0 0.0
        %1320 = vmatpush1.msra.mxu0 0.0
        %1321 = vmatprep.subr.mxu0 0.0
        %1322 = vmatpush1.msra.mxu0 0.0
        %1323 = vmatprep.subr.mxu0 0.0
        %1324 = vmatpush1.msra.mxu0 0.0
        %1325 = vmatprep.subr.mxu0 0.0
        %1326 = vmatpush1.msra.mxu0 0.0
        %1327 = vmatprep.subr.mxu0 0.0
        %1328 = vmatpush1.msra.mxu0 0.0
        %1329 = vmatprep.subr.mxu0 0.0
        %1330 = vmatpush1.msra.mxu0 0.0
        %1331 = vmatprep.mubr.f32.mxu0 0.0
        %1332 = vmatmul.mubr.f32.gmra.mrb[0].mxu0 %v1265
        %v1333 = vpop.f32.mrb[0].mxu0
        %v1334 = vadd.f32 0.0, %v1333
        %v1335 = vpop.f32.mrb[0].mxu0
        %1336 = vdwg.mxu0
        %1338 = vrot.lane.b32.xlu0 %v1334, 16
        %v1339 = vpop.permute.xlu0 %1338
        %vm1341 = vcmask 195712
        %1342 = vst.msk [vmem:[#allocation2] sm:$0xff] %vm1341, %v1339
        %1343 = vrot.lane.b32.xlu0 %v655, 104
        %v1344 = vpop.permute.xlu0 %1343
        %1345 = vrot.lane.b32.xlu0 %v737, 104
        %v1346 = vpop.permute.xlu0 %1345
        %v1347 = vsel %vm824, %v1344, 0
        %v1349 = vsel %vm824, %v1346, 0
        %1351 = vmatprep.subr.mxu0 0.0
        %1352 = vmatpush1.xpose.msra.mxu0 %v1349
        %1353 = vmatprep.subr.mxu0 0.0
        %1354 = vmatpush1.xpose.msra.mxu0 0.0
        %1355 = vmatprep.subr.mxu0 0.0
        %1356 = vmatpush1.xpose.msra.mxu0 0.0
        %1357 = vmatprep.subr.mxu0 0.0
        %1358 = vmatpush1.xpose.msra.mxu0 0.0
        %1359 = vmatprep.subr.mxu0 0.0
        %1360 = vmatpush1.xpose.msra.mxu0 0.0
        %1361 = vmatprep.subr.mxu0 0.0
        %1362 = vmatpush1.xpose.msra.mxu0 0.0
        %1363 = vmatprep.subr.mxu0 0.0
        %1364 = vmatpush1.xpose.msra.mxu0 0.0
        %1365 = vmatprep.subr.mxu0 0.0
        %1366 = vmatpush1.xpose.msra.mxu0 0.0
        %1367 = vmatprep.subr.mxu0 0.0
        %1368 = vmatpush1.xpose.msra.mxu0 0.0
        %1369 = vmatprep.subr.mxu0 0.0
        %1370 = vmatpush1.xpose.msra.mxu0 0.0
        %1371 = vmatprep.subr.mxu0 0.0
        %1372 = vmatpush1.xpose.msra.mxu0 0.0
        %1373 = vmatprep.subr.mxu0 0.0
        %1374 = vmatpush1.xpose.msra.mxu0 0.0
        %1375 = vmatprep.subr.mxu0 0.0
        %1376 = vmatpush1.xpose.msra.mxu0 0.0
        %1377 = vmatprep.subr.mxu0 0.0
        %1378 = vmatpush1.xpose.msra.mxu0 0.0
        %1379 = vmatprep.subr.mxu0 0.0
        %1380 = vmatpush1.xpose.msra.mxu0 0.0
        %1381 = vmatprep.subr.mxu0 0.0
        %1382 = vmatpush1.xpose.msra.mxu0 0.0
        %1383 = vmatprep.subr.mxu0 0.0
        %1384 = vmatpush1.xpose.msra.mxu0 0.0
        %1385 = vmatprep.subr.mxu0 0.0
        %1386 = vmatpush1.xpose.msra.mxu0 0.0
        %1387 = vmatprep.subr.mxu0 0.0
        %1388 = vmatpush1.xpose.msra.mxu0 0.0
        %1389 = vmatprep.subr.mxu0 0.0
        %1390 = vmatpush1.xpose.msra.mxu0 0.0
        %1391 = vmatprep.subr.mxu0 0.0
        %1392 = vmatpush1.xpose.msra.mxu0 0.0
        %1393 = vmatprep.subr.mxu0 0.0
        %1394 = vmatpush1.xpose.msra.mxu0 0.0
        %1395 = vmatprep.subr.mxu0 0.0
        %1396 = vmatpush1.xpose.msra.mxu0 0.0
        %1397 = vmatprep.subr.mxu0 0.0
        %1398 = vmatpush1.xpose.msra.mxu0 0.0
        %1399 = vmatprep.subr.mxu0 0.0
        %1400 = vmatpush1.xpose.msra.mxu0 0.0
        %1401 = vmatprep.subr.mxu0 0.0
        %1402 = vmatpush1.xpose.msra.mxu0 0.0
        %1403 = vmatprep.subr.mxu0 0.0
        %1404 = vmatpush1.xpose.msra.mxu0 0.0
        %1405 = vmatprep.subr.mxu0 0.0
        %1406 = vmatpush1.xpose.msra.mxu0 0.0
        %1407 = vmatprep.subr.mxu0 0.0
        %1408 = vmatpush1.xpose.msra.mxu0 0.0
        %1409 = vmatprep.subr.mxu0 0.0
        %1410 = vmatpush1.xpose.msra.mxu0 0.0
        %1411 = vmatprep.subr.mxu0 0.0
        %1412 = vmatpush1.xpose.msra.mxu0 0.0
        %1413 = vmatprep.subr.mxu0 0.0
        %1414 = vmatpush1.xpose.msra.mxu0 0.0
        %1415 = vmatprep.mubr.f32.mxu0 0.0
        %1416 = vmatmul.mubr.f32.gmra.mrb[0].mxu0 %v1347
        %v1417 = vpop.f32.mrb[0].mxu0
        %v1418 = vadd.f32 0.0, %v1417
        %v1419 = vpop.f32.mrb[0].mxu0
        %1420 = vdwg.mxu0
        %v1421 = vsel %vm824, %v1418, -inf
        %1422 = vmax.xlane.f32.xlu0 %v1421
        %v1423 = vpop.xlane.xlu0 %1422
        %v1424 = vsub.f32 %v1418, %v1423
        %v1425 = vmul.f32 %v1424, 1.442695
        %v1426 = vpow.pop %v1425
        %v1427 = vsel %vm824, %v1426, 0.0
        %1428 = vadd.xlane.f32.xlu0 %v1427
        %v1429 = vpop.xlane.xlu0 %1428
        %v1430 = vrcp.pop %v1429
        %v1431 = vmul.f32 %v1429, %v1430
        %v1432 = vsub.f32 2.0, %v1431
        %v1433 = vmul.f32 %v1430, %v1432
        %v1434 = vmul.f32 %v1426, %v1433
        %s1435 = scalar_lea.vmem %s566, 24 [#allocation16]
        %1436 = vst.msk [vmem:[%s1435] sm:$0xff] %vm824, %v1434
        %1437 = vrot.lane.b32.xlu0 %v821, 104
        %v1438 = vpop.permute.xlu0 %1437
        %v1441 = vsel %vm824, %v1434, 0
        %1443 = vmatprep.subr.mxu0 0.0
        %1444 = vmatpush1.msra.mxu0 %v1438
        %1445 = vmatprep.subr.mxu0 0.0
        %1446 = vmatpush1.msra.mxu0 0.0
        %1447 = vmatprep.subr.mxu0 0.0
        %1448 = vmatpush1.msra.mxu0 0.0
        %1449 = vmatprep.subr.mxu0 0.0
        %1450 = vmatpush1.msra.mxu0 0.0
        %1451 = vmatprep.subr.mxu0 0.0
        %1452 = vmatpush1.msra.mxu0 0.0
        %1453 = vmatprep.subr.mxu0 0.0
        %1454 = vmatpush1.msra.mxu0 0.0
        %1455 = vmatprep.subr.mxu0 0.0
        %1456 = vmatpush1.msra.mxu0 0.0
        %1457 = vmatprep.subr.mxu0 0.0
        %1458 = vmatpush1.msra.mxu0 0.0
        %1459 = vmatprep.subr.mxu0 0.0
        %1460 = vmatpush1.msra.mxu0 0.0
        %1461 = vmatprep.subr.mxu0 0.0
        %1462 = vmatpush1.msra.mxu0 0.0
        %1463 = vmatprep.subr.mxu0 0.0
        %1464 = vmatpush1.msra.mxu0 0.0
        %1465 = vmatprep.subr.mxu0 0.0
        %1466 = vmatpush1.msra.mxu0 0.0
        %1467 = vmatprep.subr.mxu0 0.0
        %1468 = vmatpush1.msra.mxu0 0.0
        %1469 = vmatprep.subr.mxu0 0.0
        %1470 = vmatpush1.msra.mxu0 0.0
        %1471 = vmatprep.subr.mxu0 0.0
        %1472 = vmatpush1.msra.mxu0 0.0
        %1473 = vmatprep.subr.mxu0 0.0
        %1474 = vmatpush1.msra.mxu0 0.0
        %1475 = vmatprep.subr.mxu0 0.0
        %1476 = vmatpush1.msra.mxu0 0.0
        %1477 = vmatprep.subr.mxu0 0.0
        %1478 = vmatpush1.msra.mxu0 0.0
        %1479 = vmatprep.subr.mxu0 0.0
        %1480 = vmatpush1.msra.mxu0 0.0
        %1481 = vmatprep.subr.mxu0 0.0
        %1482 = vmatpush1.msra.mxu0 0.0
        %1483 = vmatprep.subr.mxu0 0.0
        %1484 = vmatpush1.msra.mxu0 0.0
        %1485 = vmatprep.subr.mxu0 0.0
        %1486 = vmatpush1.msra.mxu0 0.0
        %1487 = vmatprep.subr.mxu0 0.0
        %1488 = vmatpush1.msra.mxu0 0.0
        %1489 = vmatprep.subr.mxu0 0.0
        %1490 = vmatpush1.msra.mxu0 0.0
        %1491 = vmatprep.subr.mxu0 0.0
        %1492 = vmatpush1.msra.mxu0 0.0
        %1493 = vmatprep.subr.mxu0 0.0
        %1494 = vmatpush1.msra.mxu0 0.0
        %1495 = vmatprep.subr.mxu0 0.0
        %1496 = vmatpush1.msra.mxu0 0.0
        %1497 = vmatprep.subr.mxu0 0.0
        %1498 = vmatpush1.msra.mxu0 0.0
        %1499 = vmatprep.subr.mxu0 0.0
        %1500 = vmatpush1.msra.mxu0 0.0
        %1501 = vmatprep.subr.mxu0 0.0
        %1502 = vmatpush1.msra.mxu0 0.0
        %1503 = vmatprep.subr.mxu0 0.0
        %1504 = vmatpush1.msra.mxu0 0.0
        %1505 = vmatprep.subr.mxu0 0.0
        %1506 = vmatpush1.msra.mxu0 0.0
        %1507 = vmatprep.mubr.f32.mxu0 0.0
        %1508 = vmatmul.mubr.f32.gmra.mrb[0].mxu0 %v1441
        %v1509 = vpop.f32.mrb[0].mxu0
        %v1510 = vadd.f32 0.0, %v1509
        %v1511 = vpop.f32.mrb[0].mxu0
        %1512 = vdwg.mxu0
        %1514 = vrot.lane.b32.xlu0 %v1510, 24
        %v1515 = vpop.permute.xlu0 %1514
        %vm1517 = vcmask 261312
        %1518 = vst.msk [vmem:[#allocation2] sm:$0xff] %vm1517, %v1515
        %v1519 = vld [vmem:[#allocation2] sm:$0xff]
        %v1520 = vld [vmem:[%s9] sm:$0xff]
        %v1521 = vld [vmem:[%s9 + $0x8] sm:$0xff]
        %v1522 = vld [vmem:[%s9 + $0x10] sm:$0xff]
        %v1523 = vld [vmem:[%s9 + $0x18] sm:$0xff]
        %v1524 = vld [vmem:[%s10] sm:$0x1]
        %v1526 = vlaneseq
        %v1527 = vshrl.u32 %v1526, 7
        %v1528 = vsub.s32 0, %v1527
        %v1529 = vrot.slane %v1524, %v1528
        %v1532 = vsel %vm581, %v1519, 0
        %1534 = vmatprep.subr.mxu0 0.0
        %1535 = vmatpush1.msra.mxu0 %v1520
        %1536 = vmatprep.subr.mxu0 0.0
        %1537 = vmatpush1.msra.mxu0 %v1521
        %1538 = vmatprep.subr.mxu0 0.0
        %1539 = vmatpush1.msra.mxu0 %v1522
        %1540 = vmatprep.subr.mxu0 0.0
        %1541 = vmatpush1.msra.mxu0 %v1523
        %1542 = vmatprep.subr.mxu0 0.0
        %1543 = vmatpush1.msra.mxu0 0.0
        %1544 = vmatprep.subr.mxu0 0.0
        %1545 = vmatpush1.msra.mxu0 0.0
        %1546 = vmatprep.subr.mxu0 0.0
        %1547 = vmatpush1.msra.mxu0 0.0
        %1548 = vmatprep.subr.mxu0 0.0
        %1549 = vmatpush1.msra.mxu0 0.0
        %1550 = vmatprep.subr.mxu0 0.0
        %1551 = vmatpush1.msra.mxu0 0.0
        %1552 = vmatprep.subr.mxu0 0.0
        %1553 = vmatpush1.msra.mxu0 0.0
        %1554 = vmatprep.subr.mxu0 0.0
        %1555 = vmatpush1.msra.mxu0 0.0
        %1556 = vmatprep.subr.mxu0 0.0
        %1557 = vmatpush1.msra.mxu0 0.0
        %1558 = vmatprep.subr.mxu0 0.0
        %1559 = vmatpush1.msra.mxu0 0.0
        %1560 = vmatprep.subr.mxu0 0.0
        %1561 = vmatpush1.msra.mxu0 0.0
        %1562 = vmatprep.subr.mxu0 0.0
        %1563 = vmatpush1.msra.mxu0 0.0
        %1564 = vmatprep.subr.mxu0 0.0
        %1565 = vmatpush1.msra.mxu0 0.0
        %1566 = vmatprep.subr.mxu0 0.0
        %1567 = vmatpush1.msra.mxu0 0.0
        %1568 = vmatprep.subr.mxu0 0.0
        %1569 = vmatpush1.msra.mxu0 0.0
        %1570 = vmatprep.subr.mxu0 0.0
        %1571 = vmatpush1.msra.mxu0 0.0
        %1572 = vmatprep.subr.mxu0 0.0
        %1573 = vmatpush1.msra.mxu0 0.0
        %1574 = vmatprep.subr.mxu0 0.0
        %1575 = vmatpush1.msra.mxu0 0.0
        %1576 = vmatprep.subr.mxu0 0.0
        %1577 = vmatpush1.msra.mxu0 0.0
        %1578 = vmatprep.subr.mxu0 0.0
        %1579 = vmatpush1.msra.mxu0 0.0
        %1580 = vmatprep.subr.mxu0 0.0
        %1581 = vmatpush1.msra.mxu0 0.0
        %1582 = vmatprep.subr.mxu0 0.0
        %1583 = vmatpush1.msra.mxu0 0.0
        %1584 = vmatprep.subr.mxu0 0.0
        %1585 = vmatpush1.msra.mxu0 0.0
        %1586 = vmatprep.subr.mxu0 0.0
        %1587 = vmatpush1.msra.mxu0 0.0
        %1588 = vmatprep.subr.mxu0 0.0
        %1589 = vmatpush1.msra.mxu0 0.0
        %1590 = vmatprep.subr.mxu0 0.0
        %1591 = vmatpush1.msra.mxu0 0.0
        %1592 = vmatprep.subr.mxu0 0.0
        %1593 = vmatpush1.msra.mxu0 0.0
        %1594 = vmatprep.subr.mxu0 0.0
        %1595 = vmatpush1.msra.mxu0 0.0
        %1596 = vmatprep.subr.mxu0 0.0
        %1597 = vmatpush1.msra.mxu0 0.0
        %1598 = vmatprep.mubr.f32.mxu0 0.0
        %1599 = vmatmul.mubr.f32.gmra.mrb[0].mxu0 %v1532
        %v1600 = vpop.f32.mrb[0].mxu0
        %v1601 = vadd.f32 %v1529, %v1600
        %v1602 = vpop.f32.mrb[0].mxu0
        %1603 = vdwg.mxu0
        %1604 = vst.msk [vmem:[%s559] sm:$0xff] %vm581, %v1601
        %s1605 = sand.u32 %s292, 1
        %s1606 = scalar_lea.sflag [#allocation5], %s1605
        %s1607 = sand.u32 %s292, 1
        %s1608 = smul.addr %s1607, 8
        %s1609 = scalar_lea.vmem [#allocation15], %s1608
        %s1610 = sand.u32 %s318, 1
        %s1611 = scalar_lea.sflag [#allocation17], %s1610
        %s1612 = sand.u32 %s318, 1
        %s1613 = smul.addr %s1612, 32
        %s1614 = scalar_lea.vmem [#allocation16], %s1613
        // Predicated region
        $region93: #{tpu_custom_call.1} parent=63 // pred_check
          %p1615 = pneg %p302
        $region94: #{tpu_custom_call.1} parent=63 // pred_check_branch
          %1617 = sbr.rel (%p1615) target = $region96
        $region95: #{tpu_custom_call.1} parent=63 // pred_region
          %s1619 = ssub.s32 128, 128
          %1620 = vsyncadd %s1606, %s1619
          %s1621 = smul.addr %s38, 128
          %s1622 = scalar_lea.hbm %s11, %s1621
          %s1624 = sshll.u32 %s1609, 4
          %s1625 = int_to_ptr.vmem [resolvable:$true] %s1624
          %1627 = dma.vmem_to_hbm [thread:$0]  %s1625, 128, %s1622, %s1606
        $region96: #{tpu_custom_call.1} parent=63 // pred_fallthru
          _
        // Predicated region
        $region97: #{tpu_custom_call.1} parent=63 // pred_check
          %p1628 = pneg %p328
        $region98: #{tpu_custom_call.1} parent=63 // pred_check_branch
          %1630 = sbr.rel (%p1628) target = $region100
        $region99: #{tpu_custom_call.1} parent=63 // pred_region
          %s1632 = ssub.s32 512, 512
          %1633 = vsyncadd %s1611, %s1632
          %s1634 = smul.addr %s38, 4
          %s1635 = smul.addr %s1634, 128
          %s1636 = scalar_lea.hbm %s12, %s1635
          %s1637 = sshll.u32 %s1614, 4
          %s1638 = int_to_ptr.vmem [resolvable:$true] %s1637
          %1643 = dma.vmem_to_hbm [thread:$0]  %s1638, 512, %s1636, %s1611, 128, 128, 8
        $region100: #{tpu_custom_call.1} parent=63 // pred_fallthru
          _
      $region64: #{tpu_custom_call.1} parent=5 // pred_fallthru
        _
      %p1644 = scmp.le.s32.totalorder 2, %s33
      // Predicated region
      $region101: #{tpu_custom_call.1} parent=5 // pred_check
        %p1645 = pneg %p1644
      $region102: #{tpu_custom_call.1} parent=5 // pred_check_branch
        %1647 = sbr.rel (%p1645) target = $region104
      $region103: #{tpu_custom_call.1} parent=5 // pred_region
        %s1648 = ssub.s32 %s33, 2
        // Predicated region
        $region105: #{tpu_custom_call.1} parent=103 // pred_check
          %p1649 = pneg %p308
        $region106: #{tpu_custom_call.1} parent=103 // pred_check_branch
          %1651 = sbr.rel (%p1649) target = $region108
        $region107: #{tpu_custom_call.1} parent=103 // pred_region
          %s1652 = sand.u32 %s293, 1
          %s1653 = scalar_lea.sflag [#allocation5], %s1652
          %s1654 = sand.u32 %s293, 1
          %s1655 = smul.addr %s1654, 8
          %s1656 = scalar_lea.vmem [#allocation15], %s1655
          %1657 = dma.done %s1653, 128
        $region108: #{tpu_custom_call.1} parent=103 // pred_fallthru
          _
        // Predicated region
        $region109: #{tpu_custom_call.1} parent=103 // pred_check
          %p1658 = pneg %p334
        $region110: #{tpu_custom_call.1} parent=103 // pred_check_branch
          %1660 = sbr.rel (%p1658) target = $region112
        $region111: #{tpu_custom_call.1} parent=103 // pred_region
          %s1661 = sand.u32 %s319, 1
          %s1662 = scalar_lea.sflag [#allocation17], %s1661
          %s1663 = sand.u32 %s319, 1
          %s1664 = smul.addr %s1663, 32
          %s1665 = scalar_lea.vmem [#allocation16], %s1664
          %1666 = dma.done %s1662, 512
        $region112: #{tpu_custom_call.1} parent=103 // pred_fallthru
          _
      $region104: #{tpu_custom_call.1} parent=5 // pred_fallthru
        _
    $region6: #{tpu_custom_call.1} parent=1 // loop_footer
      %s37 = sadd.s32 1, %s33
    $region7: #{tpu_custom_call.1} parent=1 // loop_footer_branch
      %32 = sbr.rel target = $region3
    $region8: #{tpu_custom_call.1} parent=1 // loop_exit
      _
    %1667 = vsyncpa [#allocation4], 1
    %s1668 = scalar_lea.sflag [#allocation4], 1
    %1669 = vsyncpa %s1668, 1
    %1670 = vsyncpa [#allocation7], 1
    %s1671 = scalar_lea.sflag [#allocation7], 1
    %1672 = vsyncpa %s1671, 1
    %1673 = vsyncpa [#allocation10], 1
    %1674 = vsyncpa [#allocation13], 1
    %1675 = vsyncpa [#allocation5], 1
    %s1676 = scalar_lea.sflag [#allocation5], 1
    %1677 = vsyncpa %s1676, 1
    %1678 = vsyncpa [#allocation17], 1
    %s1679 = scalar_lea.sflag [#allocation17], 1
    %1680 = vsyncpa %s1679, 1

</llo_original>
